<compile_context>
chip_gen: v7x
topology: tpu7x:2x2x1
jax: 0.10.0
libtpu: 0.0.40
codegen_flags: <defaults>
</compile_context>

<pallas_src>
import functools
import math

import jax
import jax.numpy as jnp
from jax import lax
from jax.experimental import pallas as pl
from jax.experimental.pallas import tpu as pltpu

_LN_EPS = 1e-7  # matches nn.LayerNorm(dim, eps=1e-07)


def _erf(x):
    # Abramowitz & Stegun 7.1.26 rational approximation (max abs err ~1.5e-7).
    # Uses only exp / mul / add / select, all of which lower cleanly in Mosaic.
    a1, a2, a3, a4, a5 = (0.254829592, -0.284496736, 1.421413741,
                          -1.453152027, 1.061405429)
    p = 0.3275911
    sign = jnp.where(x < 0.0, -1.0, 1.0)
    ax = jnp.abs(x)
    t = 1.0 / (1.0 + p * ax)
    poly = ((((a5 * t + a4) * t + a3) * t + a2) * t + a1) * t
    return sign * (1.0 - poly * jnp.exp(-ax * ax))


def _gelu_exact(x):
    # Exact (erf-based) GELU, matching torch.nn.GELU() default.
    return 0.5 * x * (1.0 + _erf(x * (1.0 / math.sqrt(2.0))))


def _layernorm(x, gamma, beta):
    mu = jnp.mean(x, axis=-1, keepdims=True)
    var = jnp.mean(jnp.square(x - mu), axis=-1, keepdims=True)
    return (x - mu) * lax.rsqrt(var + _LN_EPS) * gamma + beta


def _block_kernel(n_samples, n_heads,
                  x_ref, g1_ref, b1_ref, wqkv_ref, bqkv_ref,
                  wproj_ref, bproj_ref, g2_ref, b2_ref,
                  w1_ref, bf1_ref, w2_ref, bf2_ref, o_ref):
    # x_ref: (M, D) with M = n_samples * seq  (batch flattened into the GEMM M dim)
    m, d = x_ref.shape
    seq = m // n_samples
    head_dim = d // n_heads
    scale = head_dim ** (-0.5)

    x = x_ref[...].astype(jnp.float32)

    # --- LayerNorm 1 ------------------------------------------------------
    xn = _layernorm(x, g1_ref[...], b1_ref[...])

    # --- QKV projection: one (M, D) @ (D, 3D) GEMM over the flat batch -----
    qkv = jnp.dot(xn, wqkv_ref[...],
                  preferred_element_type=jnp.float32) + bqkv_ref[...]
    q = qkv[:, 0:d]
    k = qkv[:, d:2 * d]
    v = qkv[:, 2 * d:3 * d]

    # --- Multi-head self-attention (per sample / head, statically unrolled) -
    sample_outs = []
    for n in range(n_samples):
        r0 = n * seq
        head_outs = []
        for h in range(n_heads):
            c0 = h * head_dim
            qh = q[r0:r0 + seq, c0:c0 + head_dim]
            kh = k[r0:r0 + seq, c0:c0 + head_dim]
            vh = v[r0:r0 + seq, c0:c0 + head_dim]
            # scores = qh @ kh.T  (contract last dims; no materialized transpose)
            scores = lax.dot_general(
                qh, kh, (((1,), (1,)), ((), ())),
                preferred_element_type=jnp.float32) * scale
            scores = scores - jnp.max(scores, axis=-1, keepdims=True)
            p = jnp.exp(scores)
            p = p / jnp.sum(p, axis=-1, keepdims=True)
            head_outs.append(
                jnp.dot(p, vh, preferred_element_type=jnp.float32))
        sample_outs.append(jnp.concatenate(head_outs, axis=-1))
    attn_out = jnp.concatenate(sample_outs, axis=0)            # (M, D)

    # --- output projection + residual --------------------------------------
    y = jnp.dot(attn_out, wproj_ref[...],
                preferred_element_type=jnp.float32) + bproj_ref[...]
    x1 = x + y

    # --- LayerNorm 2 + MLP (fc1 -> GELU -> fc2) + residual ------------------
    xn2 = _layernorm(x1, g2_ref[...], b2_ref[...])
    h1 = jnp.dot(xn2, w1_ref[...],
                 preferred_element_type=jnp.float32) + bf1_ref[...]
    h1 = _gelu_exact(h1)
    h2 = jnp.dot(h1, w2_ref[...],
                 preferred_element_type=jnp.float32) + bf2_ref[...]

    o_ref[...] = (x1 + h2).astype(o_ref.dtype)


def vit_block_forward(x, params, n_heads):
    """Inference forward pass of the PyTorch `Block` module.

    Args:
      x:        (N, S, D) activations.
      params:   dict of PyTorch-layout parameters (Linear weights are (out, in)).
      n_heads:  number of attention heads.

    Returns:
      (N, S, D) output, matching Block.forward(x) in eval mode.
    """
    n, s, d = x.shape
    m = n * s
    hidden = params["fc1_w"].shape[0]
    head_dim = d // n_heads

    # Flatten batch into the GEMM M dimension (free, contiguous reshape).
    x2 = x.reshape(m, d)

    # torch Linear stores (out, in); transpose the tiny weights once so the
    # kernel runs plain x @ W GEMMs.
    w_qkv = params["qkv_w"].T                 # (D, 3D)
    b_qkv = params["qkv_b"].reshape(1, 3 * d)
    w_proj = params["proj_w"].T               # (D, D)
    b_proj = params["proj_b"].reshape(1, d)
    w_fc1 = params["fc1_w"].T                 # (D, hidden)
    b_fc1 = params["fc1_b"].reshape(1, hidden)
    w_fc2 = params["fc2_w"].T                 # (hidden, D)
    b_fc2 = params["fc2_b"].reshape(1, d)
    g1 = params["norm1_w"].reshape(1, d)
    b1 = params["norm1_b"].reshape(1, d)
    g2 = params["norm2_w"].reshape(1, d)
    b2 = params["norm2_b"].reshape(1, d)

    args = (x2, g1, b1, w_qkv, b_qkv, w_proj, b_proj, g2, b2,
            w_fc1, b_fc1, w_fc2, b_fc2)

    # Advisory cost estimate so XLA can overlap neighbors with this small call.
    flops = (2 * m * d * 3 * d            # qkv
             + 4 * m * s * d              # q@k^T and attn@v over all heads
             + 2 * m * d * d              # proj
             + 2 * m * d * hidden         # fc1
             + 2 * m * hidden * d)        # fc2
    transcendentals = n * n_heads * s * s + m * hidden + 2 * m
    bytes_accessed = sum(int(a.size) * a.dtype.itemsize for a in args) + m * d * x.dtype.itemsize

    kernel = functools.partial(_block_kernel, n, n_heads)

    out = pl.pallas_call(
        kernel,
        out_shape=jax.ShapeDtypeStruct((m, d), x.dtype),
        # Single invocation (no grid): whole problem resident in VMEM, no
        # per-sample pipeline overhead, no intermediate HBM round trips.
        in_specs=[pl.BlockSpec(memory_space=pltpu.MemorySpace.VMEM)] * len(args),
        out_specs=pl.BlockSpec(memory_space=pltpu.MemorySpace.VMEM),
        cost_estimate=pl.CostEstimate(
            flops=int(flops),
            transcendentals=int(transcendentals),
            bytes_accessed=int(bytes_accessed)),
    )(*args)

    return out.reshape(n, s, d)


if __name__ == "__main__":
    # Small shapes consistent with the module: (n_samples, n_patches, dim).
    N, S = 2, 8
    dim = 32
    n_heads = 4
    mlp_ratio = 4.0
    hidden = int(dim * mlp_ratio)

    key = jax.random.PRNGKey(0)
    keys = jax.random.split(key, 14)

    def rnd(k, shape, scale=0.1):
        return jax.random.normal(k, shape, dtype=jnp.float32) * scale

    x = jax.random.normal(keys[0], (N, S, dim), dtype=jnp.float32)
    params = {
        "norm1_w": jnp.ones((dim,), jnp.float32) + rnd(keys[1], (dim,), 0.02),
        "norm1_b": rnd(keys[2], (dim,), 0.02),
        "qkv_w": rnd(keys[3], (3 * dim, dim)),
        "qkv_b": rnd(keys[4], (3 * dim,)),
        "proj_w": rnd(keys[5], (dim, dim)),
        "proj_b": rnd(keys[6], (dim,)),
        "norm2_w": jnp.ones((dim,), jnp.float32) + rnd(keys[7], (dim,), 0.02),
        "norm2_b": rnd(keys[8], (dim,), 0.02),
        "fc1_w": rnd(keys[9], (hidden, dim)),
        "fc1_b": rnd(keys[10], (hidden,)),
        "fc2_w": rnd(keys[11], (dim, hidden)),
        "fc2_b": rnd(keys[12], (dim,)),
    }

    out = vit_block_forward(x, params, n_heads)
    out = jax.block_until_ready(out)

    # ---- plain-JAX reference (same math as the PyTorch Block in eval mode) ----
    def reference(x):
        def ln(z, g, b):
            mu = z.mean(-1, keepdims=True)
            var = ((z - mu) ** 2).mean(-1, keepdims=True)
            return (z - mu) / jnp.sqrt(var + _LN_EPS) * g + b

        head_dim = dim // n_heads
        xn = ln(x, params["norm1_w"], params["norm1_b"])
        qkv = xn @ params["qkv_w"].T + params["qkv_b"]
        qkv = qkv.reshape(N, S, 3, n_heads, head_dim).transpose(2, 0, 3, 1, 4)
        q, k, v = qkv[0], qkv[1], qkv[2]
        scores = (q @ k.transpose(0, 1, 3, 2)) * head_dim ** (-0.5)
        attn = jax.nn.softmax(scores, axis=-1)
        wa = (attn @ v).transpose(0, 2, 1, 3).reshape(N, S, dim)
        y = wa @ params["proj_w"].T + params["proj_b"]
        x = x + y
        xn2 = ln(x, params["norm2_w"], params["norm2_b"])
        h = jax.nn.gelu(xn2 @ params["fc1_w"].T + params["fc1_b"],
                        approximate=False)
        h = h @ params["fc2_w"].T + params["fc2_b"]
        return x + h

    ref = reference(x)
    assert out.shape == (N, S, dim), out.shape
    max_err = float(jnp.max(jnp.abs(out - ref)))
    assert jnp.allclose(out, ref, atol=1e-4, rtol=1e-4), max_err
    print("KERNEL_OK")
</pallas_src>

<mosaic_0001>
module attributes {stable_mosaic.version = 11 : i64} {
  func.func @_block_kernel(%arg0: memref<16x32xf32, #tpu.memory_space<vmem>>, %arg1: memref<1x32xf32, #tpu.memory_space<vmem>>, %arg2: memref<1x32xf32, #tpu.memory_space<vmem>>, %arg3: memref<32x96xf32, #tpu.memory_space<vmem>>, %arg4: memref<1x96xf32, #tpu.memory_space<vmem>>, %arg5: memref<32x32xf32, #tpu.memory_space<vmem>>, %arg6: memref<1x32xf32, #tpu.memory_space<vmem>>, %arg7: memref<1x32xf32, #tpu.memory_space<vmem>>, %arg8: memref<1x32xf32, #tpu.memory_space<vmem>>, %arg9: memref<32x128xf32, #tpu.memory_space<vmem>>, %arg10: memref<1x128xf32, #tpu.memory_space<vmem>>, %arg11: memref<128x32xf32, #tpu.memory_space<vmem>>, %arg12: memref<1x32xf32, #tpu.memory_space<vmem>>, %arg13: memref<16x32xf32, #tpu.memory_space<vmem>>) attributes {dimension_semantics = [], scalar_prefetch = 0 : i64, scratch_operands = 0 : i64, tpu.core_type = #tpu.core_type<tc>} {
    %c0 = arith.constant 0 : index
    %c0_0 = arith.constant 0 : index
    %0 = vector.load %arg0[%c0, %c0_0] : memref<16x32xf32, #tpu.memory_space<vmem>>, vector<16x32xf32>
    %c0_1 = arith.constant 0 : index
    %c0_2 = arith.constant 0 : index
    %1 = vector.load %arg1[%c0_1, %c0_2] : memref<1x32xf32, #tpu.memory_space<vmem>>, vector<1x32xf32>
    %c0_3 = arith.constant 0 : index
    %c0_4 = arith.constant 0 : index
    %2 = vector.load %arg2[%c0_3, %c0_4] : memref<1x32xf32, #tpu.memory_space<vmem>>, vector<1x32xf32>
    %cst = arith.constant dense<0.000000e+00> : vector<16xf32>
    %3 = vector.multi_reduction <add>, %0, %cst [1] : vector<16x32xf32> to vector<16xf32>
    %4 = vector.shape_cast %3 : vector<16xf32> to vector<16x1xf32>
    %cst_5 = arith.constant 3.200000e+01 : f32
    %5 = vector.broadcast %cst_5 : f32 to vector<16x1xf32>
    %6 = arith.divf %4, %5 : vector<16x1xf32>
    %7 = vector.broadcast %6 : vector<16x1xf32> to vector<16x32xf32>
    %8 = arith.subf %0, %7 : vector<16x32xf32>
    %9 = arith.mulf %8, %8 : vector<16x32xf32>
    %cst_6 = arith.constant dense<0.000000e+00> : vector<16xf32>
    %10 = vector.multi_reduction <add>, %9, %cst_6 [1] : vector<16x32xf32> to vector<16xf32>
    %11 = vector.shape_cast %10 : vector<16xf32> to vector<16x1xf32>
    %cst_7 = arith.constant 3.200000e+01 : f32
    %12 = vector.broadcast %cst_7 : f32 to vector<16x1xf32>
    %13 = arith.divf %11, %12 : vector<16x1xf32>
    %14 = vector.broadcast %6 : vector<16x1xf32> to vector<16x32xf32>
    %15 = arith.subf %0, %14 : vector<16x32xf32>
    %cst_8 = arith.constant 1.000000e-07 : f32
    %16 = vector.broadcast %cst_8 : f32 to vector<16x1xf32>
    %17 = arith.addf %13, %16 : vector<16x1xf32>
    %18 = math.rsqrt %17 : vector<16x1xf32>
    %19 = vector.broadcast %18 : vector<16x1xf32> to vector<16x32xf32>
    %20 = arith.mulf %15, %19 : vector<16x32xf32>
    %21 = vector.broadcast %1 : vector<1x32xf32> to vector<16x32xf32>
    %22 = arith.mulf %20, %21 : vector<16x32xf32>
    %23 = vector.broadcast %2 : vector<1x32xf32> to vector<16x32xf32>
    %24 = arith.addf %22, %23 : vector<16x32xf32>
    %c0_9 = arith.constant 0 : index
    %c0_10 = arith.constant 0 : index
    %25 = vector.load %arg3[%c0_9, %c0_10] : memref<32x96xf32, #tpu.memory_space<vmem>>, vector<32x96xf32>
    %cst_11 = arith.constant dense<0.000000e+00> : vector<16x96xf32>
    %26 = tpu.matmul %24, %25, %cst_11 {dimension_numbers = #tpu.dot_dimension_numbers<[1], [0], [0], [1], [0, 0, 1, 1], [], []>} : vector<16x32xf32>, vector<32x96xf32>, vector<16x96xf32> -> vector<16x96xf32>
    %c0_12 = arith.constant 0 : index
    %c0_13 = arith.constant 0 : index
    %27 = vector.load %arg4[%c0_12, %c0_13] : memref<1x96xf32, #tpu.memory_space<vmem>>, vector<1x96xf32>
    %28 = vector.broadcast %27 : vector<1x96xf32> to vector<16x96xf32>
    %29 = arith.addf %26, %28 : vector<16x96xf32>
    %30 = vector.extract_strided_slice %29 {offsets = [0, 0], sizes = [16, 32], strides = [1, 1]} : vector<16x96xf32> to vector<16x32xf32>
    %31 = vector.extract_strided_slice %29 {offsets = [0, 32], sizes = [16, 32], strides = [1, 1]} : vector<16x96xf32> to vector<16x32xf32>
    %32 = vector.extract_strided_slice %29 {offsets = [0, 64], sizes = [16, 32], strides = [1, 1]} : vector<16x96xf32> to vector<16x32xf32>
    %33 = vector.extract_strided_slice %30 {offsets = [0, 0], sizes = [8, 8], strides = [1, 1]} : vector<16x32xf32> to vector<8x8xf32>
    %34 = vector.extract_strided_slice %31 {offsets = [0, 0], sizes = [8, 8], strides = [1, 1]} : vector<16x32xf32> to vector<8x8xf32>
    %35 = vector.extract_strided_slice %32 {offsets = [0, 0], sizes = [8, 8], strides = [1, 1]} : vector<16x32xf32> to vector<8x8xf32>
    %cst_14 = arith.constant dense<0.000000e+00> : vector<8x8xf32>
    %36 = tpu.matmul %33, %34, %cst_14 {dimension_numbers = #tpu.dot_dimension_numbers<[1], [1], [0], [0], [0, 0, 1, 0], [], []>} : vector<8x8xf32>, vector<8x8xf32>, vector<8x8xf32> -> vector<8x8xf32>
    %cst_15 = arith.constant 0.353553385 : f32
    %37 = vector.broadcast %cst_15 : f32 to vector<8x8xf32>
    %38 = arith.mulf %36, %37 : vector<8x8xf32>
    %cst_16 = arith.constant dense<0xFF800000> : vector<8xf32>
    %39 = vector.multi_reduction <maximumf>, %38, %cst_16 [1] : vector<8x8xf32> to vector<8xf32>
    %40 = vector.shape_cast %39 : vector<8xf32> to vector<8x1xf32>
    %41 = vector.broadcast %40 : vector<8x1xf32> to vector<8x8xf32>
    %42 = arith.subf %38, %41 : vector<8x8xf32>
    %43 = math.exp %42 : vector<8x8xf32>
    %cst_17 = arith.constant dense<0.000000e+00> : vector<8xf32>
    %44 = vector.multi_reduction <add>, %43, %cst_17 [1] : vector<8x8xf32> to vector<8xf32>
    %45 = vector.shape_cast %44 : vector<8xf32> to vector<8x1xf32>
    %46 = vector.broadcast %45 : vector<8x1xf32> to vector<8x8xf32>
    %47 = arith.divf %43, %46 : vector<8x8xf32>
    %cst_18 = arith.constant dense<0.000000e+00> : vector<8x8xf32>
    %48 = tpu.matmul %47, %35, %cst_18 {dimension_numbers = #tpu.dot_dimension_numbers<[1], [0], [0], [1], [0, 0, 1, 1], [], []>} : vector<8x8xf32>, vector<8x8xf32>, vector<8x8xf32> -> vector<8x8xf32>
    %49 = vector.extract_strided_slice %30 {offsets = [0, 8], sizes = [8, 8], strides = [1, 1]} : vector<16x32xf32> to vector<8x8xf32>
    %50 = vector.extract_strided_slice %31 {offsets = [0, 8], sizes = [8, 8], strides = [1, 1]} : vector<16x32xf32> to vector<8x8xf32>
    %51 = vector.extract_strided_slice %32 {offsets = [0, 8], sizes = [8, 8], strides = [1, 1]} : vector<16x32xf32> to vector<8x8xf32>
    %cst_19 = arith.constant dense<0.000000e+00> : vector<8x8xf32>
    %52 = tpu.matmul %49, %50, %cst_19 {dimension_numbers = #tpu.dot_dimension_numbers<[1], [1], [0], [0], [0, 0, 1, 0], [], []>} : vector<8x8xf32>, vector<8x8xf32>, vector<8x8xf32> -> vector<8x8xf32>
    %cst_20 = arith.constant 0.353553385 : f32
    %53 = vector.broadcast %cst_20 : f32 to vector<8x8xf32>
    %54 = arith.mulf %52, %53 : vector<8x8xf32>
    %cst_21 = arith.constant dense<0xFF800000> : vector<8xf32>
    %55 = vector.multi_reduction <maximumf>, %54, %cst_21 [1] : vector<8x8xf32> to vector<8xf32>
    %56 = vector.shape_cast %55 : vector<8xf32> to vector<8x1xf32>
    %57 = vector.broadcast %56 : vector<8x1xf32> to vector<8x8xf32>
    %58 = arith.subf %54, %57 : vector<8x8xf32>
    %59 = math.exp %58 : vector<8x8xf32>
    %cst_22 = arith.constant dense<0.000000e+00> : vector<8xf32>
    %60 = vector.multi_reduction <add>, %59, %cst_22 [1] : vector<8x8xf32> to vector<8xf32>
    %61 = vector.shape_cast %60 : vector<8xf32> to vector<8x1xf32>
    %62 = vector.broadcast %61 : vector<8x1xf32> to vector<8x8xf32>
    %63 = arith.divf %59, %62 : vector<8x8xf32>
    %cst_23 = arith.constant dense<0.000000e+00> : vector<8x8xf32>
    %64 = tpu.matmul %63, %51, %cst_23 {dimension_numbers = #tpu.dot_dimension_numbers<[1], [0], [0], [1], [0, 0, 1, 1], [], []>} : vector<8x8xf32>, vector<8x8xf32>, vector<8x8xf32> -> vector<8x8xf32>
    %65 = vector.extract_strided_slice %30 {offsets = [0, 16], sizes = [8, 8], strides = [1, 1]} : vector<16x32xf32> to vector<8x8xf32>
    %66 = vector.extract_strided_slice %31 {offsets = [0, 16], sizes = [8, 8], strides = [1, 1]} : vector<16x32xf32> to vector<8x8xf32>
    %67 = vector.extract_strided_slice %32 {offsets = [0, 16], sizes = [8, 8], strides = [1, 1]} : vector<16x32xf32> to vector<8x8xf32>
    %cst_24 = arith.constant dense<0.000000e+00> : vector<8x8xf32>
    %68 = tpu.matmul %65, %66, %cst_24 {dimension_numbers = #tpu.dot_dimension_numbers<[1], [1], [0], [0], [0, 0, 1, 0], [], []>} : vector<8x8xf32>, vector<8x8xf32>, vector<8x8xf32> -> vector<8x8xf32>
    %cst_25 = arith.constant 0.353553385 : f32
    %69 = vector.broadcast %cst_25 : f32 to vector<8x8xf32>
    %70 = arith.mulf %68, %69 : vector<8x8xf32>
    %cst_26 = arith.constant dense<0xFF800000> : vector<8xf32>
    %71 = vector.multi_reduction <maximumf>, %70, %cst_26 [1] : vector<8x8xf32> to vector<8xf32>
    %72 = vector.shape_cast %71 : vector<8xf32> to vector<8x1xf32>
    %73 = vector.broadcast %72 : vector<8x1xf32> to vector<8x8xf32>
    %74 = arith.subf %70, %73 : vector<8x8xf32>
    %75 = math.exp %74 : vector<8x8xf32>
    %cst_27 = arith.constant dense<0.000000e+00> : vector<8xf32>
    %76 = vector.multi_reduction <add>, %75, %cst_27 [1] : vector<8x8xf32> to vector<8xf32>
    %77 = vector.shape_cast %76 : vector<8xf32> to vector<8x1xf32>
    %78 = vector.broadcast %77 : vector<8x1xf32> to vector<8x8xf32>
    %79 = arith.divf %75, %78 : vector<8x8xf32>
    %cst_28 = arith.constant dense<0.000000e+00> : vector<8x8xf32>
    %80 = tpu.matmul %79, %67, %cst_28 {dimension_numbers = #tpu.dot_dimension_numbers<[1], [0], [0], [1], [0, 0, 1, 1], [], []>} : vector<8x8xf32>, vector<8x8xf32>, vector<8x8xf32> -> vector<8x8xf32>
    %81 = vector.extract_strided_slice %30 {offsets = [0, 24], sizes = [8, 8], strides = [1, 1]} : vector<16x32xf32> to vector<8x8xf32>
    %82 = vector.extract_strided_slice %31 {offsets = [0, 24], sizes = [8, 8], strides = [1, 1]} : vector<16x32xf32> to vector<8x8xf32>
    %83 = vector.extract_strided_slice %32 {offsets = [0, 24], sizes = [8, 8], strides = [1, 1]} : vector<16x32xf32> to vector<8x8xf32>
    %cst_29 = arith.constant dense<0.000000e+00> : vector<8x8xf32>
    %84 = tpu.matmul %81, %82, %cst_29 {dimension_numbers = #tpu.dot_dimension_numbers<[1], [1], [0], [0], [0, 0, 1, 0], [], []>} : vector<8x8xf32>, vector<8x8xf32>, vector<8x8xf32> -> vector<8x8xf32>
    %cst_30 = arith.constant 0.353553385 : f32
    %85 = vector.broadcast %cst_30 : f32 to vector<8x8xf32>
    %86 = arith.mulf %84, %85 : vector<8x8xf32>
    %cst_31 = arith.constant dense<0xFF800000> : vector<8xf32>
    %87 = vector.multi_reduction <maximumf>, %86, %cst_31 [1] : vector<8x8xf32> to vector<8xf32>
    %88 = vector.shape_cast %87 : vector<8xf32> to vector<8x1xf32>
    %89 = vector.broadcast %88 : vector<8x1xf32> to vector<8x8xf32>
    %90 = arith.subf %86, %89 : vector<8x8xf32>
    %91 = math.exp %90 : vector<8x8xf32>
    %cst_32 = arith.constant dense<0.000000e+00> : vector<8xf32>
    %92 = vector.multi_reduction <add>, %91, %cst_32 [1] : vector<8x8xf32> to vector<8xf32>
    %93 = vector.shape_cast %92 : vector<8xf32> to vector<8x1xf32>
    %94 = vector.broadcast %93 : vector<8x1xf32> to vector<8x8xf32>
    %95 = arith.divf %91, %94 : vector<8x8xf32>
    %cst_33 = arith.constant dense<0.000000e+00> : vector<8x8xf32>
    %96 = tpu.matmul %95, %83, %cst_33 {dimension_numbers = #tpu.dot_dimension_numbers<[1], [0], [0], [1], [0, 0, 1, 1], [], []>} : vector<8x8xf32>, vector<8x8xf32>, vector<8x8xf32> -> vector<8x8xf32>
    %97 = tpu.concatenate %48, %64, %80, %96 in 1 : vector<8x8xf32>, vector<8x8xf32>, vector<8x8xf32>, vector<8x8xf32> -> vector<8x32xf32>
    %98 = vector.extract_strided_slice %30 {offsets = [8, 0], sizes = [8, 8], strides = [1, 1]} : vector<16x32xf32> to vector<8x8xf32>
    %99 = vector.extract_strided_slice %31 {offsets = [8, 0], sizes = [8, 8], strides = [1, 1]} : vector<16x32xf32> to vector<8x8xf32>
    %100 = vector.extract_strided_slice %32 {offsets = [8, 0], sizes = [8, 8], strides = [1, 1]} : vector<16x32xf32> to vector<8x8xf32>
    %cst_34 = arith.constant dense<0.000000e+00> : vector<8x8xf32>
    %101 = tpu.matmul %98, %99, %cst_34 {dimension_numbers = #tpu.dot_dimension_numbers<[1], [1], [0], [0], [0, 0, 1, 0], [], []>} : vector<8x8xf32>, vector<8x8xf32>, vector<8x8xf32> -> vector<8x8xf32>
    %cst_35 = arith.constant 0.353553385 : f32
    %102 = vector.broadcast %cst_35 : f32 to vector<8x8xf32>
    %103 = arith.mulf %101, %102 : vector<8x8xf32>
    %cst_36 = arith.constant dense<0xFF800000> : vector<8xf32>
    %104 = vector.multi_reduction <maximumf>, %103, %cst_36 [1] : vector<8x8xf32> to vector<8xf32>
    %105 = vector.shape_cast %104 : vector<8xf32> to vector<8x1xf32>
    %106 = vector.broadcast %105 : vector<8x1xf32> to vector<8x8xf32>
    %107 = arith.subf %103, %106 : vector<8x8xf32>
    %108 = math.exp %107 : vector<8x8xf32>
    %cst_37 = arith.constant dense<0.000000e+00> : vector<8xf32>
    %109 = vector.multi_reduction <add>, %108, %cst_37 [1] : vector<8x8xf32> to vector<8xf32>
    %110 = vector.shape_cast %109 : vector<8xf32> to vector<8x1xf32>
    %111 = vector.broadcast %110 : vector<8x1xf32> to vector<8x8xf32>
    %112 = arith.divf %108, %111 : vector<8x8xf32>
    %cst_38 = arith.constant dense<0.000000e+00> : vector<8x8xf32>
    %113 = tpu.matmul %112, %100, %cst_38 {dimension_numbers = #tpu.dot_dimension_numbers<[1], [0], [0], [1], [0, 0, 1, 1], [], []>} : vector<8x8xf32>, vector<8x8xf32>, vector<8x8xf32> -> vector<8x8xf32>
    %114 = vector.extract_strided_slice %30 {offsets = [8, 8], sizes = [8, 8], strides = [1, 1]} : vector<16x32xf32> to vector<8x8xf32>
    %115 = vector.extract_strided_slice %31 {offsets = [8, 8], sizes = [8, 8], strides = [1, 1]} : vector<16x32xf32> to vector<8x8xf32>
    %116 = vector.extract_strided_slice %32 {offsets = [8, 8], sizes = [8, 8], strides = [1, 1]} : vector<16x32xf32> to vector<8x8xf32>
    %cst_39 = arith.constant dense<0.000000e+00> : vector<8x8xf32>
    %117 = tpu.matmul %114, %115, %cst_39 {dimension_numbers = #tpu.dot_dimension_numbers<[1], [1], [0], [0], [0, 0, 1, 0], [], []>} : vector<8x8xf32>, vector<8x8xf32>, vector<8x8xf32> -> vector<8x8xf32>
    %cst_40 = arith.constant 0.353553385 : f32
    %118 = vector.broadcast %cst_40 : f32 to vector<8x8xf32>
    %119 = arith.mulf %117, %118 : vector<8x8xf32>
    %cst_41 = arith.constant dense<0xFF800000> : vector<8xf32>
    %120 = vector.multi_reduction <maximumf>, %119, %cst_41 [1] : vector<8x8xf32> to vector<8xf32>
    %121 = vector.shape_cast %120 : vector<8xf32> to vector<8x1xf32>
    %122 = vector.broadcast %121 : vector<8x1xf32> to vector<8x8xf32>
    %123 = arith.subf %119, %122 : vector<8x8xf32>
    %124 = math.exp %123 : vector<8x8xf32>
    %cst_42 = arith.constant dense<0.000000e+00> : vector<8xf32>
    %125 = vector.multi_reduction <add>, %124, %cst_42 [1] : vector<8x8xf32> to vector<8xf32>
    %126 = vector.shape_cast %125 : vector<8xf32> to vector<8x1xf32>
    %127 = vector.broadcast %126 : vector<8x1xf32> to vector<8x8xf32>
    %128 = arith.divf %124, %127 : vector<8x8xf32>
    %cst_43 = arith.constant dense<0.000000e+00> : vector<8x8xf32>
    %129 = tpu.matmul %128, %116, %cst_43 {dimension_numbers = #tpu.dot_dimension_numbers<[1], [0], [0], [1], [0, 0, 1, 1], [], []>} : vector<8x8xf32>, vector<8x8xf32>, vector<8x8xf32> -> vector<8x8xf32>
    %130 = vector.extract_strided_slice %30 {offsets = [8, 16], sizes = [8, 8], strides = [1, 1]} : vector<16x32xf32> to vector<8x8xf32>
    %131 = vector.extract_strided_slice %31 {offsets = [8, 16], sizes = [8, 8], strides = [1, 1]} : vector<16x32xf32> to vector<8x8xf32>
    %132 = vector.extract_strided_slice %32 {offsets = [8, 16], sizes = [8, 8], strides = [1, 1]} : vector<16x32xf32> to vector<8x8xf32>
    %cst_44 = arith.constant dense<0.000000e+00> : vector<8x8xf32>
    %133 = tpu.matmul %130, %131, %cst_44 {dimension_numbers = #tpu.dot_dimension_numbers<[1], [1], [0], [0], [0, 0, 1, 0], [], []>} : vector<8x8xf32>, vector<8x8xf32>, vector<8x8xf32> -> vector<8x8xf32>
    %cst_45 = arith.constant 0.353553385 : f32
    %134 = vector.broadcast %cst_45 : f32 to vector<8x8xf32>
    %135 = arith.mulf %133, %134 : vector<8x8xf32>
    %cst_46 = arith.constant dense<0xFF800000> : vector<8xf32>
    %136 = vector.multi_reduction <maximumf>, %135, %cst_46 [1] : vector<8x8xf32> to vector<8xf32>
    %137 = vector.shape_cast %136 : vector<8xf32> to vector<8x1xf32>
    %138 = vector.broadcast %137 : vector<8x1xf32> to vector<8x8xf32>
    %139 = arith.subf %135, %138 : vector<8x8xf32>
    %140 = math.exp %139 : vector<8x8xf32>
    %cst_47 = arith.constant dense<0.000000e+00> : vector<8xf32>
    %141 = vector.multi_reduction <add>, %140, %cst_47 [1] : vector<8x8xf32> to vector<8xf32>
    %142 = vector.shape_cast %141 : vector<8xf32> to vector<8x1xf32>
    %143 = vector.broadcast %142 : vector<8x1xf32> to vector<8x8xf32>
    %144 = arith.divf %140, %143 : vector<8x8xf32>
    %cst_48 = arith.constant dense<0.000000e+00> : vector<8x8xf32>
    %145 = tpu.matmul %144, %132, %cst_48 {dimension_numbers = #tpu.dot_dimension_numbers<[1], [0], [0], [1], [0, 0, 1, 1], [], []>} : vector<8x8xf32>, vector<8x8xf32>, vector<8x8xf32> -> vector<8x8xf32>
    %146 = vector.extract_strided_slice %30 {offsets = [8, 24], sizes = [8, 8], strides = [1, 1]} : vector<16x32xf32> to vector<8x8xf32>
    %147 = vector.extract_strided_slice %31 {offsets = [8, 24], sizes = [8, 8], strides = [1, 1]} : vector<16x32xf32> to vector<8x8xf32>
    %148 = vector.extract_strided_slice %32 {offsets = [8, 24], sizes = [8, 8], strides = [1, 1]} : vector<16x32xf32> to vector<8x8xf32>
    %cst_49 = arith.constant dense<0.000000e+00> : vector<8x8xf32>
    %149 = tpu.matmul %146, %147, %cst_49 {dimension_numbers = #tpu.dot_dimension_numbers<[1], [1], [0], [0], [0, 0, 1, 0], [], []>} : vector<8x8xf32>, vector<8x8xf32>, vector<8x8xf32> -> vector<8x8xf32>
    %cst_50 = arith.constant 0.353553385 : f32
    %150 = vector.broadcast %cst_50 : f32 to vector<8x8xf32>
    %151 = arith.mulf %149, %150 : vector<8x8xf32>
    %cst_51 = arith.constant dense<0xFF800000> : vector<8xf32>
    %152 = vector.multi_reduction <maximumf>, %151, %cst_51 [1] : vector<8x8xf32> to vector<8xf32>
    %153 = vector.shape_cast %152 : vector<8xf32> to vector<8x1xf32>
    %154 = vector.broadcast %153 : vector<8x1xf32> to vector<8x8xf32>
    %155 = arith.subf %151, %154 : vector<8x8xf32>
    %156 = math.exp %155 : vector<8x8xf32>
    %cst_52 = arith.constant dense<0.000000e+00> : vector<8xf32>
    %157 = vector.multi_reduction <add>, %156, %cst_52 [1] : vector<8x8xf32> to vector<8xf32>
    %158 = vector.shape_cast %157 : vector<8xf32> to vector<8x1xf32>
    %159 = vector.broadcast %158 : vector<8x1xf32> to vector<8x8xf32>
    %160 = arith.divf %156, %159 : vector<8x8xf32>
    %cst_53 = arith.constant dense<0.000000e+00> : vector<8x8xf32>
    %161 = tpu.matmul %160, %148, %cst_53 {dimension_numbers = #tpu.dot_dimension_numbers<[1], [0], [0], [1], [0, 0, 1, 1], [], []>} : vector<8x8xf32>, vector<8x8xf32>, vector<8x8xf32> -> vector<8x8xf32>
    %162 = tpu.concatenate %113, %129, %145, %161 in 1 : vector<8x8xf32>, vector<8x8xf32>, vector<8x8xf32>, vector<8x8xf32> -> vector<8x32xf32>
    %163 = tpu.concatenate %97, %162 in 0 : vector<8x32xf32>, vector<8x32xf32> -> vector<16x32xf32>
    %c0_54 = arith.constant 0 : index
    %c0_55 = arith.constant 0 : index
    %164 = vector.load %arg5[%c0_54, %c0_55] : memref<32x32xf32, #tpu.memory_space<vmem>>, vector<32x32xf32>
    %cst_56 = arith.constant dense<0.000000e+00> : vector<16x32xf32>
    %165 = tpu.matmul %163, %164, %cst_56 {dimension_numbers = #tpu.dot_dimension_numbers<[1], [0], [0], [1], [0, 0, 1, 1], [], []>} : vector<16x32xf32>, vector<32x32xf32>, vector<16x32xf32> -> vector<16x32xf32>
    %c0_57 = arith.constant 0 : index
    %c0_58 = arith.constant 0 : index
    %166 = vector.load %arg6[%c0_57, %c0_58] : memref<1x32xf32, #tpu.memory_space<vmem>>, vector<1x32xf32>
    %167 = vector.broadcast %166 : vector<1x32xf32> to vector<16x32xf32>
    %168 = arith.addf %165, %167 : vector<16x32xf32>
    %169 = arith.addf %0, %168 : vector<16x32xf32>
    %c0_59 = arith.constant 0 : index
    %c0_60 = arith.constant 0 : index
    %170 = vector.load %arg7[%c0_59, %c0_60] : memref<1x32xf32, #tpu.memory_space<vmem>>, vector<1x32xf32>
    %c0_61 = arith.constant 0 : index
    %c0_62 = arith.constant 0 : index
    %171 = vector.load %arg8[%c0_61, %c0_62] : memref<1x32xf32, #tpu.memory_space<vmem>>, vector<1x32xf32>
    %cst_63 = arith.constant dense<0.000000e+00> : vector<16xf32>
    %172 = vector.multi_reduction <add>, %169, %cst_63 [1] : vector<16x32xf32> to vector<16xf32>
    %173 = vector.shape_cast %172 : vector<16xf32> to vector<16x1xf32>
    %cst_64 = arith.constant 3.200000e+01 : f32
    %174 = vector.broadcast %cst_64 : f32 to vector<16x1xf32>
    %175 = arith.divf %173, %174 : vector<16x1xf32>
    %176 = vector.broadcast %175 : vector<16x1xf32> to vector<16x32xf32>
    %177 = arith.subf %169, %176 : vector<16x32xf32>
    %178 = arith.mulf %177, %177 : vector<16x32xf32>
    %cst_65 = arith.constant dense<0.000000e+00> : vector<16xf32>
    %179 = vector.multi_reduction <add>, %178, %cst_65 [1] : vector<16x32xf32> to vector<16xf32>
    %180 = vector.shape_cast %179 : vector<16xf32> to vector<16x1xf32>
    %cst_66 = arith.constant 3.200000e+01 : f32
    %181 = vector.broadcast %cst_66 : f32 to vector<16x1xf32>
    %182 = arith.divf %180, %181 : vector<16x1xf32>
    %183 = vector.broadcast %175 : vector<16x1xf32> to vector<16x32xf32>
    %184 = arith.subf %169, %183 : vector<16x32xf32>
    %cst_67 = arith.constant 1.000000e-07 : f32
    %185 = vector.broadcast %cst_67 : f32 to vector<16x1xf32>
    %186 = arith.addf %182, %185 : vector<16x1xf32>
    %187 = math.rsqrt %186 : vector<16x1xf32>
    %188 = vector.broadcast %187 : vector<16x1xf32> to vector<16x32xf32>
    %189 = arith.mulf %184, %188 : vector<16x32xf32>
    %190 = vector.broadcast %170 : vector<1x32xf32> to vector<16x32xf32>
    %191 = arith.mulf %189, %190 : vector<16x32xf32>
    %192 = vector.broadcast %171 : vector<1x32xf32> to vector<16x32xf32>
    %193 = arith.addf %191, %192 : vector<16x32xf32>
    %c0_68 = arith.constant 0 : index
    %c0_69 = arith.constant 0 : index
    %194 = vector.load %arg9[%c0_68, %c0_69] : memref<32x128xf32, #tpu.memory_space<vmem>>, vector<32x128xf32>
    %cst_70 = arith.constant dense<0.000000e+00> : vector<16x128xf32>
    %195 = tpu.matmul %193, %194, %cst_70 {dimension_numbers = #tpu.dot_dimension_numbers<[1], [0], [0], [1], [0, 0, 1, 1], [], []>} : vector<16x32xf32>, vector<32x128xf32>, vector<16x128xf32> -> vector<16x128xf32>
    %c0_71 = arith.constant 0 : index
    %c0_72 = arith.constant 0 : index
    %196 = vector.load %arg10[%c0_71, %c0_72] : memref<1x128xf32, #tpu.memory_space<vmem>>, vector<1x128xf32>
    %197 = vector.broadcast %196 : vector<1x128xf32> to vector<16x128xf32>
    %198 = arith.addf %195, %197 : vector<16x128xf32>
    %cst_73 = arith.constant 5.000000e-01 : f32
    %199 = vector.broadcast %cst_73 : f32 to vector<16x128xf32>
    %200 = arith.mulf %199, %198 : vector<16x128xf32>
    %cst_74 = arith.constant 0.707106769 : f32
    %201 = vector.broadcast %cst_74 : f32 to vector<16x128xf32>
    %202 = arith.mulf %198, %201 : vector<16x128xf32>
    %cst_75 = arith.constant 0.000000e+00 : f32
    %203 = vector.broadcast %cst_75 : f32 to vector<16x128xf32>
    %204 = arith.cmpf olt, %202, %203 : vector<16x128xf32>
    %cst_76 = arith.constant -1.000000e+00 : f32
    %cst_77 = arith.constant 1.000000e+00 : f32
    %205 = vector.broadcast %cst_76 : f32 to vector<16x128xf32>
    %206 = vector.broadcast %cst_77 : f32 to vector<16x128xf32>
    %207 = arith.select %204, %205, %206 : vector<16x128xi1>, vector<16x128xf32>
    %208 = math.absf %202 : vector<16x128xf32>
    %cst_78 = arith.constant 0.327591091 : f32
    %209 = vector.broadcast %cst_78 : f32 to vector<16x128xf32>
    %210 = arith.mulf %209, %208 : vector<16x128xf32>
    %cst_79 = arith.constant 1.000000e+00 : f32
    %211 = vector.broadcast %cst_79 : f32 to vector<16x128xf32>
    %212 = arith.addf %211, %210 : vector<16x128xf32>
    %cst_80 = arith.constant 1.000000e+00 : f32
    %213 = vector.broadcast %cst_80 : f32 to vector<16x128xf32>
    %214 = arith.divf %213, %212 : vector<16x128xf32>
    %cst_81 = arith.constant 1.06140542 : f32
    %215 = vector.broadcast %cst_81 : f32 to vector<16x128xf32>
    %216 = arith.mulf %215, %214 : vector<16x128xf32>
    %cst_82 = arith.constant -1.45315206 : f32
    %217 = vector.broadcast %cst_82 : f32 to vector<16x128xf32>
    %218 = arith.addf %216, %217 : vector<16x128xf32>
    %219 = arith.mulf %218, %214 : vector<16x128xf32>
    %cst_83 = arith.constant 1.42141378 : f32
    %220 = vector.broadcast %cst_83 : f32 to vector<16x128xf32>
    %221 = arith.addf %219, %220 : vector<16x128xf32>
    %222 = arith.mulf %221, %214 : vector<16x128xf32>
    %cst_84 = arith.constant -0.284496725 : f32
    %223 = vector.broadcast %cst_84 : f32 to vector<16x128xf32>
    %224 = arith.addf %222, %223 : vector<16x128xf32>
    %225 = arith.mulf %224, %214 : vector<16x128xf32>
    %cst_85 = arith.constant 0.254829586 : f32
    %226 = vector.broadcast %cst_85 : f32 to vector<16x128xf32>
    %227 = arith.addf %225, %226 : vector<16x128xf32>
    %228 = arith.mulf %227, %214 : vector<16x128xf32>
    %cst_86 = arith.constant 0.000000e+00 : f32
    %229 = vector.broadcast %cst_86 : f32 to vector<16x128xf32>
    %230 = arith.subf %229, %208 : vector<16x128xf32>
    %231 = arith.mulf %230, %208 : vector<16x128xf32>
    %232 = math.exp %231 : vector<16x128xf32>
    %233 = arith.mulf %228, %232 : vector<16x128xf32>
    %cst_87 = arith.constant 1.000000e+00 : f32
    %234 = vector.broadcast %cst_87 : f32 to vector<16x128xf32>
    %235 = arith.subf %234, %233 : vector<16x128xf32>
    %236 = arith.mulf %207, %235 : vector<16x128xf32>
    %cst_88 = arith.constant 1.000000e+00 : f32
    %237 = vector.broadcast %cst_88 : f32 to vector<16x128xf32>
    %238 = arith.addf %237, %236 : vector<16x128xf32>
    %239 = arith.mulf %200, %238 : vector<16x128xf32>
    %c0_89 = arith.constant 0 : index
    %c0_90 = arith.constant 0 : index
    %240 = vector.load %arg11[%c0_89, %c0_90] : memref<128x32xf32, #tpu.memory_space<vmem>>, vector<128x32xf32>
    %cst_91 = arith.constant dense<0.000000e+00> : vector<16x32xf32>
    %241 = tpu.matmul %239, %240, %cst_91 {dimension_numbers = #tpu.dot_dimension_numbers<[1], [0], [0], [1], [0, 0, 1, 1], [], []>} : vector<16x128xf32>, vector<128x32xf32>, vector<16x32xf32> -> vector<16x32xf32>
    %c0_92 = arith.constant 0 : index
    %c0_93 = arith.constant 0 : index
    %242 = vector.load %arg12[%c0_92, %c0_93] : memref<1x32xf32, #tpu.memory_space<vmem>>, vector<1x32xf32>
    %243 = vector.broadcast %242 : vector<1x32xf32> to vector<16x32xf32>
    %244 = arith.addf %241, %243 : vector<16x32xf32>
    %245 = arith.addf %169, %244 : vector<16x32xf32>
    %c0_94 = arith.constant 0 : index
    %c0_95 = arith.constant 0 : index
    %246 = vector.load %arg13[%c0_94, %c0_95] : memref<16x32xf32, #tpu.memory_space<vmem>>, vector<16x32xf32>
    tpu.vector_store %arg13[%c0_94, %c0_95], %245 {strides = array<i32>} : memref<16x32xf32, #tpu.memory_space<vmem>>, vector<16x32xf32>,
    return
  }
}

</mosaic_0001>

<llo_original>
// kernel: tpu_custom_call.1
$region0: #{tpu_custom_call.1}
  #allocation0 [shape = 'u32[]', space=smem, size = 0x4, offset = 0x4, fixed_abs, tag = 'smem constant byte address 0x4 - core index']
  #allocation1 [shape = 'u32[144,128]{1,0:T(1,128)}', space=vmem, size = 0x12000, scoped, tag = 'internal scratch']
  %s0 = inlined_call_operand.vmem [shape: f32[16,32], index: 0, kind: input, shape index: {}]
  %s1 = inlined_call_operand.vmem [shape: f32[1,32], index: 1, kind: input, shape index: {}]
  %s2 = inlined_call_operand.vmem [shape: f32[1,32], index: 2, kind: input, shape index: {}]
  %s3 = inlined_call_operand.vmem [shape: f32[32,96], index: 3, kind: input, shape index: {}]
  %s4 = inlined_call_operand.vmem [shape: f32[1,96], index: 4, kind: input, shape index: {}]
  %s5 = inlined_call_operand.vmem [shape: f32[32,32], index: 5, kind: input, shape index: {}]
  %s6 = inlined_call_operand.vmem [shape: f32[1,32], index: 6, kind: input, shape index: {}]
  %s7 = inlined_call_operand.vmem [shape: f32[1,32], index: 7, kind: input, shape index: {}]
  %s8 = inlined_call_operand.vmem [shape: f32[1,32], index: 8, kind: input, shape index: {}]
  %s9 = inlined_call_operand.vmem [shape: f32[32,128], index: 9, kind: input, shape index: {}]
  %s10 = inlined_call_operand.vmem [shape: f32[1,128], index: 10, kind: input, shape index: {}]
  %s11 = inlined_call_operand.vmem [shape: f32[128,32], index: 11, kind: input, shape index: {}]
  %s12 = inlined_call_operand.vmem [shape: f32[1,32], index: 12, kind: input, shape index: {}]
  %s13 = inlined_call_operand.hbm [shape: f32[16,32], index: 13, kind: output, shape index: {}]
  %s14 = sld [smem:[#allocation0]]
  $region62: #{tpu_custom_call.1} parent=0
    _
  %s16 = ssub.s32 1, %s14
  %s17 = scalar_select 0, %s16, %s14
  $region1: #{tpu_custom_call.1} parent=0
    #allocation2 [shape = 'u8[8192]{0}', space=vmem, size = 0x2000, scoped, tag = 'output window, operand 0, single buffered']
    #allocation3 [shape = 's32[1]{0}', space=sflag, size = 0x4, scoped, tag = 'scoped memory for tpu_custom_call.1']
    %18 = vsyncpa [#allocation3], 0
    // Predicated region
    $region2: #{tpu_custom_call.1} parent=1 // pred_check
      _
    $region3: #{tpu_custom_call.1} parent=1 // pred_check_branch
      %20 = sbr.rel (0) target = $region5
    $region4: #{tpu_custom_call.1} parent=1 // pred_region
      _
    $region5: #{tpu_custom_call.1} parent=1 // pred_fallthru
      _
    // Predicated region
    $region6: #{tpu_custom_call.1} parent=1 // pred_check
      _
    $region7: #{tpu_custom_call.1} parent=1 // pred_check_branch
      %22 = sbr.rel (0) target = $region9
    $region8: #{tpu_custom_call.1} parent=1 // pred_region
      _
    $region9: #{tpu_custom_call.1} parent=1 // pred_fallthru
      _
    // Predicated region
    $region10: #{tpu_custom_call.1} parent=1 // pred_check
      _
    $region11: #{tpu_custom_call.1} parent=1 // pred_check_branch
      %24 = sbr.rel (0) target = $region13
    $region12: #{tpu_custom_call.1} parent=1 // pred_region
      _
    $region13: #{tpu_custom_call.1} parent=1 // pred_fallthru
      _
    // Predicated region
    $region14: #{tpu_custom_call.1} parent=1 // pred_check
      _
    $region15: #{tpu_custom_call.1} parent=1 // pred_check_branch
      %26 = sbr.rel (0) target = $region17
    $region16: #{tpu_custom_call.1} parent=1 // pred_region
      _
    $region17: #{tpu_custom_call.1} parent=1 // pred_fallthru
      _
    // Predicated region
    $region18: #{tpu_custom_call.1} parent=1 // pred_check
      _
    $region19: #{tpu_custom_call.1} parent=1 // pred_check_branch
      %28 = sbr.rel (0) target = $region21
    $region20: #{tpu_custom_call.1} parent=1 // pred_region
      _
    $region21: #{tpu_custom_call.1} parent=1 // pred_fallthru
      _
    // Predicated region
    $region22: #{tpu_custom_call.1} parent=1 // pred_check
      _
    $region23: #{tpu_custom_call.1} parent=1 // pred_check_branch
      %30 = sbr.rel (0) target = $region25
    $region24: #{tpu_custom_call.1} parent=1 // pred_region
      _
    $region25: #{tpu_custom_call.1} parent=1 // pred_fallthru
      _
    // Predicated region
    $region26: #{tpu_custom_call.1} parent=1 // pred_check
      _
    $region27: #{tpu_custom_call.1} parent=1 // pred_check_branch
      %32 = sbr.rel (0) target = $region29
    $region28: #{tpu_custom_call.1} parent=1 // pred_region
      _
    $region29: #{tpu_custom_call.1} parent=1 // pred_fallthru
      _
    // Predicated region
    $region30: #{tpu_custom_call.1} parent=1 // pred_check
      _
    $region31: #{tpu_custom_call.1} parent=1 // pred_check_branch
      %34 = sbr.rel (0) target = $region33
    $region32: #{tpu_custom_call.1} parent=1 // pred_region
      _
    $region33: #{tpu_custom_call.1} parent=1 // pred_fallthru
      _
    // Predicated region
    $region34: #{tpu_custom_call.1} parent=1 // pred_check
      _
    $region35: #{tpu_custom_call.1} parent=1 // pred_check_branch
      %36 = sbr.rel (0) target = $region37
    $region36: #{tpu_custom_call.1} parent=1 // pred_region
      _
    $region37: #{tpu_custom_call.1} parent=1 // pred_fallthru
      _
    // Predicated region
    $region38: #{tpu_custom_call.1} parent=1 // pred_check
      _
    $region39: #{tpu_custom_call.1} parent=1 // pred_check_branch
      %38 = sbr.rel (0) target = $region41
    $region40: #{tpu_custom_call.1} parent=1 // pred_region
      _
    $region41: #{tpu_custom_call.1} parent=1 // pred_fallthru
      _
    // Predicated region
    $region42: #{tpu_custom_call.1} parent=1 // pred_check
      _
    $region43: #{tpu_custom_call.1} parent=1 // pred_check_branch
      %40 = sbr.rel (0) target = $region45
    $region44: #{tpu_custom_call.1} parent=1 // pred_region
      _
    $region45: #{tpu_custom_call.1} parent=1 // pred_fallthru
      _
    // Predicated region
    $region46: #{tpu_custom_call.1} parent=1 // pred_check
      _
    $region47: #{tpu_custom_call.1} parent=1 // pred_check_branch
      %42 = sbr.rel (0) target = $region49
    $region48: #{tpu_custom_call.1} parent=1 // pred_region
      _
    $region49: #{tpu_custom_call.1} parent=1 // pred_fallthru
      _
    // Predicated region
    $region50: #{tpu_custom_call.1} parent=1 // pred_check
      _
    $region51: #{tpu_custom_call.1} parent=1 // pred_check_branch
      %44 = sbr.rel (0) target = $region53
    $region52: #{tpu_custom_call.1} parent=1 // pred_region
      _
    $region53: #{tpu_custom_call.1} parent=1 // pred_fallthru
      _
    %v45 = vld [vmem:[%s0] sm:$0xff]
    %v46 = vld [vmem:[%s0 + $0x8] sm:$0xff]
    %v47 = vld [vmem:[%s1] sm:$0x1]
    %v48 = vld [vmem:[%s2] sm:$0x1]
    %vm49 = vcmask 261120
    %v50 = vsel %vm49, %v45, 0.0
    %51 = vadd.xlane.f32.xlu0 %v50
    %v52 = vpop.xlane.xlu0 %51
    %v53 = vsel %vm49, %v46, 0.0
    %54 = vadd.xlane.f32.xlu0 %v53
    %v55 = vpop.xlane.xlu0 %54
    %v56 = vrcp.pop 32.0
    %v57 = vmul.f32 %v52, %v56
    %v58 = vmul.f32 %v55, %v56
    %v59 = vsub.f32 %v45, %v57
    %v60 = vsub.f32 %v46, %v58
    %v61 = vmul.f32 %v59, %v59
    %v62 = vmul.f32 %v60, %v60
    %v63 = vsel %vm49, %v61, 0.0
    %64 = vadd.xlane.f32.xlu0 %v63
    %v65 = vpop.xlane.xlu0 %64
    %v66 = vsel %vm49, %v62, 0.0
    %67 = vadd.xlane.f32.xlu0 %v66
    %v68 = vpop.xlane.xlu0 %67
    %v69 = vmul.f32 %v65, %v56
    %v70 = vmul.f32 %v68, %v56
    %v71 = vadd.f32 %v69, 1e-07
    %v72 = vadd.f32 %v70, 1e-07
    %v73 = vrsqrt.pop %v71
    %v74 = vrsqrt.pop %v72
    %v75 = vmul.f32 %v59, %v73
    %v76 = vmul.f32 %v60, %v74
    %v78 = vlaneseq
    %v79 = vshrl.u32 %v78, 7
    %v80 = vsub.s32 0, %v79
    %v81 = vrot.slane %v47, %v80
    %v83 = vmul.f32 %v75, %v81
    %v84 = vmul.f32 %v76, %v81
    %v86 = vlaneseq
    %v87 = vshrl.u32 %v86, 7
    %v88 = vsub.s32 0, %v87
    %v89 = vrot.slane %v48, %v88
    %v91 = vadd.f32 %v83, %v89
    %v92 = vadd.f32 %v84, %v89
    %v93 = vld [vmem:[%s3] sm:$0xff]
    %v94 = vld [vmem:[%s3 + $0x8] sm:$0xff]
    %v95 = vld [vmem:[%s3 + $0x10] sm:$0xff]
    %v96 = vld [vmem:[%s3 + $0x18] sm:$0xff]
    %v97 = vld [vmem:[%s4] sm:$0x1]
    %v99 = vlaneseq
    %v100 = vshrl.u32 %v99, 7
    %v101 = vsub.s32 0, %v100
    %v102 = vrot.slane %v97, %v101
    %v105 = vsel %vm49, %v91, 0
    %v108 = vsel %vm49, %v92, 0
    %110 = vmatprep.subr.mxu0 0.0
    %111 = vmatpush1.msra.mxu0 %v93
    %112 = vmatprep.subr.mxu0 0.0
    %113 = vmatpush1.msra.mxu0 %v94
    %114 = vmatprep.subr.mxu0 0.0
    %115 = vmatpush1.msra.mxu0 %v95
    %116 = vmatprep.subr.mxu0 0.0
    %117 = vmatpush1.msra.mxu0 %v96
    %118 = vmatprep.subr.mxu0 0.0
    %119 = vmatpush1.msra.mxu0 0.0
    %120 = vmatprep.subr.mxu0 0.0
    %121 = vmatpush1.msra.mxu0 0.0
    %122 = vmatprep.subr.mxu0 0.0
    %123 = vmatpush1.msra.mxu0 0.0
    %124 = vmatprep.subr.mxu0 0.0
    %125 = vmatpush1.msra.mxu0 0.0
    %126 = vmatprep.subr.mxu0 0.0
    %127 = vmatpush1.msra.mxu0 0.0
    %128 = vmatprep.subr.mxu0 0.0
    %129 = vmatpush1.msra.mxu0 0.0
    %130 = vmatprep.subr.mxu0 0.0
    %131 = vmatpush1.msra.mxu0 0.0
    %132 = vmatprep.subr.mxu0 0.0
    %133 = vmatpush1.msra.mxu0 0.0
    %134 = vmatprep.subr.mxu0 0.0
    %135 = vmatpush1.msra.mxu0 0.0
    %136 = vmatprep.subr.mxu0 0.0
    %137 = vmatpush1.msra.mxu0 0.0
    %138 = vmatprep.subr.mxu0 0.0
    %139 = vmatpush1.msra.mxu0 0.0
    %140 = vmatprep.subr.mxu0 0.0
    %141 = vmatpush1.msra.mxu0 0.0
    %142 = vmatprep.subr.mxu0 0.0
    %143 = vmatpush1.msra.mxu0 0.0
    %144 = vmatprep.subr.mxu0 0.0
    %145 = vmatpush1.msra.mxu0 0.0
    %146 = vmatprep.subr.mxu0 0.0
    %147 = vmatpush1.msra.mxu0 0.0
    %148 = vmatprep.subr.mxu0 0.0
    %149 = vmatpush1.msra.mxu0 0.0
    %150 = vmatprep.subr.mxu0 0.0
    %151 = vmatpush1.msra.mxu0 0.0
    %152 = vmatprep.subr.mxu0 0.0
    %153 = vmatpush1.msra.mxu0 0.0
    %154 = vmatprep.subr.mxu0 0.0
    %155 = vmatpush1.msra.mxu0 0.0
    %156 = vmatprep.subr.mxu0 0.0
    %157 = vmatpush1.msra.mxu0 0.0
    %158 = vmatprep.subr.mxu0 0.0
    %159 = vmatpush1.msra.mxu0 0.0
    %160 = vmatprep.subr.mxu0 0.0
    %161 = vmatpush1.msra.mxu0 0.0
    %162 = vmatprep.subr.mxu0 0.0
    %163 = vmatpush1.msra.mxu0 0.0
    %164 = vmatprep.subr.mxu0 0.0
    %165 = vmatpush1.msra.mxu0 0.0
    %166 = vmatprep.subr.mxu0 0.0
    %167 = vmatpush1.msra.mxu0 0.0
    %168 = vmatprep.subr.mxu0 0.0
    %169 = vmatpush1.msra.mxu0 0.0
    %170 = vmatprep.subr.mxu0 0.0
    %171 = vmatpush1.msra.mxu0 0.0
    %172 = vmatprep.subr.mxu0 0.0
    %173 = vmatpush1.msra.mxu0 0.0
    %174 = vmatprep.mubr.f32.mxu0 0.0
    %175 = vmatmul.mubr.f32.gmra.mrb[0].mxu0 %v105
    %v176 = vpop.f32.mrb[0].mxu0
    %v177 = vadd.f32 %v102, %v176
    %v178 = vpop.f32.mrb[0].mxu0
    %179 = vmatprep.mubr.f32.mxu0 0.0
    %180 = vmatmul.mubr.f32.gmra.mrb[0].mxu0 %v108
    %v181 = vpop.f32.mrb[0].mxu0
    %v182 = vadd.f32 %v102, %v181
    %v183 = vpop.f32.mrb[0].mxu0
    %184 = vdwg.mxu0
    %186 = vrot.lane.b32.xlu0 %v177, 96
    %v187 = vpop.permute.xlu0 %186
    %vm188 = vcmask 64512
    %v189 = vsel %vm188, %v177, 0
    %v191 = vsel %vm188, %v187, 0
    %193 = vmatprep.subr.mxu0 0.0
    %194 = vmatpush1.xpose.msra.mxu0 %v191
    %195 = vmatprep.subr.mxu0 0.0
    %196 = vmatpush1.xpose.msra.mxu0 0.0
    %197 = vmatprep.subr.mxu0 0.0
    %198 = vmatpush1.xpose.msra.mxu0 0.0
    %199 = vmatprep.subr.mxu0 0.0
    %200 = vmatpush1.xpose.msra.mxu0 0.0
    %201 = vmatprep.subr.mxu0 0.0
    %202 = vmatpush1.xpose.msra.mxu0 0.0
    %203 = vmatprep.subr.mxu0 0.0
    %204 = vmatpush1.xpose.msra.mxu0 0.0
    %205 = vmatprep.subr.mxu0 0.0
    %206 = vmatpush1.xpose.msra.mxu0 0.0
    %207 = vmatprep.subr.mxu0 0.0
    %208 = vmatpush1.xpose.msra.mxu0 0.0
    %209 = vmatprep.subr.mxu0 0.0
    %210 = vmatpush1.xpose.msra.mxu0 0.0
    %211 = vmatprep.subr.mxu0 0.0
    %212 = vmatpush1.xpose.msra.mxu0 0.0
    %213 = vmatprep.subr.mxu0 0.0
    %214 = vmatpush1.xpose.msra.mxu0 0.0
    %215 = vmatprep.subr.mxu0 0.0
    %216 = vmatpush1.xpose.msra.mxu0 0.0
    %217 = vmatprep.subr.mxu0 0.0
    %218 = vmatpush1.xpose.msra.mxu0 0.0
    %219 = vmatprep.subr.mxu0 0.0
    %220 = vmatpush1.xpose.msra.mxu0 0.0
    %221 = vmatprep.subr.mxu0 0.0
    %222 = vmatpush1.xpose.msra.mxu0 0.0
    %223 = vmatprep.subr.mxu0 0.0
    %224 = vmatpush1.xpose.msra.mxu0 0.0
    %225 = vmatprep.subr.mxu0 0.0
    %226 = vmatpush1.xpose.msra.mxu0 0.0
    %227 = vmatprep.subr.mxu0 0.0
    %228 = vmatpush1.xpose.msra.mxu0 0.0
    %229 = vmatprep.subr.mxu0 0.0
    %230 = vmatpush1.xpose.msra.mxu0 0.0
    %231 = vmatprep.subr.mxu0 0.0
    %232 = vmatpush1.xpose.msra.mxu0 0.0
    %233 = vmatprep.subr.mxu0 0.0
    %234 = vmatpush1.xpose.msra.mxu0 0.0
    %235 = vmatprep.subr.mxu0 0.0
    %236 = vmatpush1.xpose.msra.mxu0 0.0
    %237 = vmatprep.subr.mxu0 0.0
    %238 = vmatpush1.xpose.msra.mxu0 0.0
    %239 = vmatprep.subr.mxu0 0.0
    %240 = vmatpush1.xpose.msra.mxu0 0.0
    %241 = vmatprep.subr.mxu0 0.0
    %242 = vmatpush1.xpose.msra.mxu0 0.0
    %243 = vmatprep.subr.mxu0 0.0
    %244 = vmatpush1.xpose.msra.mxu0 0.0
    %245 = vmatprep.subr.mxu0 0.0
    %246 = vmatpush1.xpose.msra.mxu0 0.0
    %247 = vmatprep.subr.mxu0 0.0
    %248 = vmatpush1.xpose.msra.mxu0 0.0
    %249 = vmatprep.subr.mxu0 0.0
    %250 = vmatpush1.xpose.msra.mxu0 0.0
    %251 = vmatprep.subr.mxu0 0.0
    %252 = vmatpush1.xpose.msra.mxu0 0.0
    %253 = vmatprep.subr.mxu0 0.0
    %254 = vmatpush1.xpose.msra.mxu0 0.0
    %255 = vmatprep.subr.mxu0 0.0
    %256 = vmatpush1.xpose.msra.mxu0 0.0
    %257 = vmatprep.mubr.f32.mxu0 0.0
    %258 = vmatmul.mubr.f32.gmra.mrb[0].mxu0 %v189
    %v259 = vpop.f32.mrb[0].mxu0
    %v260 = vadd.f32 0.0, %v259
    %v261 = vpop.f32.mrb[0].mxu0
    %262 = vdwg.mxu0
    %v263 = vmul.f32 %v260, 0.35355338
    %v264 = vsel %vm188, %v263, -inf
    %265 = vmax.xlane.f32.xlu0 %v264
    %v266 = vpop.xlane.xlu0 %265
    %v267 = vsub.f32 %v263, %v266
    %v268 = vmul.f32 %v267, 1.442695
    %v269 = vpow.pop %v268
    %v270 = vsel %vm188, %v269, 0.0
    %271 = vadd.xlane.f32.xlu0 %v270
    %v272 = vpop.xlane.xlu0 %271
    %v273 = vrcp.pop %v272
    %v274 = vmul.f32 %v269, %v273
    %275 = vrot.lane.b32.xlu0 %v177, 64
    %v276 = vpop.permute.xlu0 %275
    %v279 = vsel %vm188, %v274, 0
    %281 = vmatprep.subr.mxu0 0.0
    %282 = vmatpush1.msra.mxu0 %v276
    %283 = vmatprep.subr.mxu0 0.0
    %284 = vmatpush1.msra.mxu0 0.0
    %285 = vmatprep.subr.mxu0 0.0
    %286 = vmatpush1.msra.mxu0 0.0
    %287 = vmatprep.subr.mxu0 0.0
    %288 = vmatpush1.msra.mxu0 0.0
    %289 = vmatprep.subr.mxu0 0.0
    %290 = vmatpush1.msra.mxu0 0.0
    %291 = vmatprep.subr.mxu0 0.0
    %292 = vmatpush1.msra.mxu0 0.0
    %293 = vmatprep.subr.mxu0 0.0
    %294 = vmatpush1.msra.mxu0 0.0
    %295 = vmatprep.subr.mxu0 0.0
    %296 = vmatpush1.msra.mxu0 0.0
    %297 = vmatprep.subr.mxu0 0.0
    %298 = vmatpush1.msra.mxu0 0.0
    %299 = vmatprep.subr.mxu0 0.0
    %300 = vmatpush1.msra.mxu0 0.0
    %301 = vmatprep.subr.mxu0 0.0
    %302 = vmatpush1.msra.mxu0 0.0
    %303 = vmatprep.subr.mxu0 0.0
    %304 = vmatpush1.msra.mxu0 0.0
    %305 = vmatprep.subr.mxu0 0.0
    %306 = vmatpush1.msra.mxu0 0.0
    %307 = vmatprep.subr.mxu0 0.0
    %308 = vmatpush1.msra.mxu0 0.0
    %309 = vmatprep.subr.mxu0 0.0
    %310 = vmatpush1.msra.mxu0 0.0
    %311 = vmatprep.subr.mxu0 0.0
    %312 = vmatpush1.msra.mxu0 0.0
    %313 = vmatprep.subr.mxu0 0.0
    %314 = vmatpush1.msra.mxu0 0.0
    %315 = vmatprep.subr.mxu0 0.0
    %316 = vmatpush1.msra.mxu0 0.0
    %317 = vmatprep.subr.mxu0 0.0
    %318 = vmatpush1.msra.mxu0 0.0
    %319 = vmatprep.subr.mxu0 0.0
    %320 = vmatpush1.msra.mxu0 0.0
    %321 = vmatprep.subr.mxu0 0.0
    %322 = vmatpush1.msra.mxu0 0.0
    %323 = vmatprep.subr.mxu0 0.0
    %324 = vmatpush1.msra.mxu0 0.0
    %325 = vmatprep.subr.mxu0 0.0
    %326 = vmatpush1.msra.mxu0 0.0
    %327 = vmatprep.subr.mxu0 0.0
    %328 = vmatpush1.msra.mxu0 0.0
    %329 = vmatprep.subr.mxu0 0.0
    %330 = vmatpush1.msra.mxu0 0.0
    %331 = vmatprep.subr.mxu0 0.0
    %332 = vmatpush1.msra.mxu0 0.0
    %333 = vmatprep.subr.mxu0 0.0
    %334 = vmatpush1.msra.mxu0 0.0
    %335 = vmatprep.subr.mxu0 0.0
    %336 = vmatpush1.msra.mxu0 0.0
    %337 = vmatprep.subr.mxu0 0.0
    %338 = vmatpush1.msra.mxu0 0.0
    %339 = vmatprep.subr.mxu0 0.0
    %340 = vmatpush1.msra.mxu0 0.0
    %341 = vmatprep.subr.mxu0 0.0
    %342 = vmatpush1.msra.mxu0 0.0
    %343 = vmatprep.subr.mxu0 0.0
    %344 = vmatpush1.msra.mxu0 0.0
    %345 = vmatprep.mubr.f32.mxu0 0.0
    %346 = vmatmul.mubr.f32.gmra.mrb[0].mxu0 %v279
    %v347 = vpop.f32.mrb[0].mxu0
    %v348 = vadd.f32 0.0, %v347
    %v349 = vpop.f32.mrb[0].mxu0
    %350 = vdwg.mxu0
    %351 = vrot.lane.b32.xlu0 %v177, 120
    %v352 = vpop.permute.xlu0 %351
    %353 = vrot.lane.b32.xlu0 %v177, 88
    %v354 = vpop.permute.xlu0 %353
    %v355 = vsel %vm188, %v352, 0
    %v357 = vsel %vm188, %v354, 0
    %359 = vmatprep.subr.mxu0 0.0
    %360 = vmatpush1.xpose.msra.mxu0 %v357
    %361 = vmatprep.subr.mxu0 0.0
    %362 = vmatpush1.xpose.msra.mxu0 0.0
    %363 = vmatprep.subr.mxu0 0.0
    %364 = vmatpush1.xpose.msra.mxu0 0.0
    %365 = vmatprep.subr.mxu0 0.0
    %366 = vmatpush1.xpose.msra.mxu0 0.0
    %367 = vmatprep.subr.mxu0 0.0
    %368 = vmatpush1.xpose.msra.mxu0 0.0
    %369 = vmatprep.subr.mxu0 0.0
    %370 = vmatpush1.xpose.msra.mxu0 0.0
    %371 = vmatprep.subr.mxu0 0.0
    %372 = vmatpush1.xpose.msra.mxu0 0.0
    %373 = vmatprep.subr.mxu0 0.0
    %374 = vmatpush1.xpose.msra.mxu0 0.0
    %375 = vmatprep.subr.mxu0 0.0
    %376 = vmatpush1.xpose.msra.mxu0 0.0
    %377 = vmatprep.subr.mxu0 0.0
    %378 = vmatpush1.xpose.msra.mxu0 0.0
    %379 = vmatprep.subr.mxu0 0.0
    %380 = vmatpush1.xpose.msra.mxu0 0.0
    %381 = vmatprep.subr.mxu0 0.0
    %382 = vmatpush1.xpose.msra.mxu0 0.0
    %383 = vmatprep.subr.mxu0 0.0
    %384 = vmatpush1.xpose.msra.mxu0 0.0
    %385 = vmatprep.subr.mxu0 0.0
    %386 = vmatpush1.xpose.msra.mxu0 0.0
    %387 = vmatprep.subr.mxu0 0.0
    %388 = vmatpush1.xpose.msra.mxu0 0.0
    %389 = vmatprep.subr.mxu0 0.0
    %390 = vmatpush1.xpose.msra.mxu0 0.0
    %391 = vmatprep.subr.mxu0 0.0
    %392 = vmatpush1.xpose.msra.mxu0 0.0
    %393 = vmatprep.subr.mxu0 0.0
    %394 = vmatpush1.xpose.msra.mxu0 0.0
    %395 = vmatprep.subr.mxu0 0.0
    %396 = vmatpush1.xpose.msra.mxu0 0.0
    %397 = vmatprep.subr.mxu0 0.0
    %398 = vmatpush1.xpose.msra.mxu0 0.0
    %399 = vmatprep.subr.mxu0 0.0
    %400 = vmatpush1.xpose.msra.mxu0 0.0
    %401 = vmatprep.subr.mxu0 0.0
    %402 = vmatpush1.xpose.msra.mxu0 0.0
    %403 = vmatprep.subr.mxu0 0.0
    %404 = vmatpush1.xpose.msra.mxu0 0.0
    %405 = vmatprep.subr.mxu0 0.0
    %406 = vmatpush1.xpose.msra.mxu0 0.0
    %407 = vmatprep.subr.mxu0 0.0
    %408 = vmatpush1.xpose.msra.mxu0 0.0
    %409 = vmatprep.subr.mxu0 0.0
    %410 = vmatpush1.xpose.msra.mxu0 0.0
    %411 = vmatprep.subr.mxu0 0.0
    %412 = vmatpush1.xpose.msra.mxu0 0.0
    %413 = vmatprep.subr.mxu0 0.0
    %414 = vmatpush1.xpose.msra.mxu0 0.0
    %415 = vmatprep.subr.mxu0 0.0
    %416 = vmatpush1.xpose.msra.mxu0 0.0
    %417 = vmatprep.subr.mxu0 0.0
    %418 = vmatpush1.xpose.msra.mxu0 0.0
    %419 = vmatprep.subr.mxu0 0.0
    %420 = vmatpush1.xpose.msra.mxu0 0.0
    %421 = vmatprep.subr.mxu0 0.0
    %422 = vmatpush1.xpose.msra.mxu0 0.0
    %423 = vmatprep.mubr.f32.mxu0 0.0
    %424 = vmatmul.mubr.f32.gmra.mrb[0].mxu0 %v355
    %v425 = vpop.f32.mrb[0].mxu0
    %v426 = vadd.f32 0.0, %v425
    %v427 = vpop.f32.mrb[0].mxu0
    %428 = vdwg.mxu0
    %v429 = vmul.f32 %v426, 0.35355338
    %v430 = vsel %vm188, %v429, -inf
    %431 = vmax.xlane.f32.xlu0 %v430
    %v432 = vpop.xlane.xlu0 %431
    %v433 = vsub.f32 %v429, %v432
    %v434 = vmul.f32 %v433, 1.442695
    %v435 = vpow.pop %v434
    %v436 = vsel %vm188, %v435, 0.0
    %437 = vadd.xlane.f32.xlu0 %v436
    %v438 = vpop.xlane.xlu0 %437
    %v439 = vrcp.pop %v438
    %v440 = vmul.f32 %v435, %v439
    %441 = vrot.lane.b32.xlu0 %v177, 56
    %v442 = vpop.permute.xlu0 %441
    %v445 = vsel %vm188, %v440, 0
    %447 = vmatprep.subr.mxu0 0.0
    %448 = vmatpush1.msra.mxu0 %v442
    %449 = vmatprep.subr.mxu0 0.0
    %450 = vmatpush1.msra.mxu0 0.0
    %451 = vmatprep.subr.mxu0 0.0
    %452 = vmatpush1.msra.mxu0 0.0
    %453 = vmatprep.subr.mxu0 0.0
    %454 = vmatpush1.msra.mxu0 0.0
    %455 = vmatprep.subr.mxu0 0.0
    %456 = vmatpush1.msra.mxu0 0.0
    %457 = vmatprep.subr.mxu0 0.0
    %458 = vmatpush1.msra.mxu0 0.0
    %459 = vmatprep.subr.mxu0 0.0
    %460 = vmatpush1.msra.mxu0 0.0
    %461 = vmatprep.subr.mxu0 0.0
    %462 = vmatpush1.msra.mxu0 0.0
    %463 = vmatprep.subr.mxu0 0.0
    %464 = vmatpush1.msra.mxu0 0.0
    %465 = vmatprep.subr.mxu0 0.0
    %466 = vmatpush1.msra.mxu0 0.0
    %467 = vmatprep.subr.mxu0 0.0
    %468 = vmatpush1.msra.mxu0 0.0
    %469 = vmatprep.subr.mxu0 0.0
    %470 = vmatpush1.msra.mxu0 0.0
    %471 = vmatprep.subr.mxu0 0.0
    %472 = vmatpush1.msra.mxu0 0.0
    %473 = vmatprep.subr.mxu0 0.0
    %474 = vmatpush1.msra.mxu0 0.0
    %475 = vmatprep.subr.mxu0 0.0
    %476 = vmatpush1.msra.mxu0 0.0
    %477 = vmatprep.subr.mxu0 0.0
    %478 = vmatpush1.msra.mxu0 0.0
    %479 = vmatprep.subr.mxu0 0.0
    %480 = vmatpush1.msra.mxu0 0.0
    %481 = vmatprep.subr.mxu0 0.0
    %482 = vmatpush1.msra.mxu0 0.0
    %483 = vmatprep.subr.mxu0 0.0
    %484 = vmatpush1.msra.mxu0 0.0
    %485 = vmatprep.subr.mxu0 0.0
    %486 = vmatpush1.msra.mxu0 0.0
    %487 = vmatprep.subr.mxu0 0.0
    %488 = vmatpush1.msra.mxu0 0.0
    %489 = vmatprep.subr.mxu0 0.0
    %490 = vmatpush1.msra.mxu0 0.0
    %491 = vmatprep.subr.mxu0 0.0
    %492 = vmatpush1.msra.mxu0 0.0
    %493 = vmatprep.subr.mxu0 0.0
    %494 = vmatpush1.msra.mxu0 0.0
    %495 = vmatprep.subr.mxu0 0.0
    %496 = vmatpush1.msra.mxu0 0.0
    %497 = vmatprep.subr.mxu0 0.0
    %498 = vmatpush1.msra.mxu0 0.0
    %499 = vmatprep.subr.mxu0 0.0
    %500 = vmatpush1.msra.mxu0 0.0
    %501 = vmatprep.subr.mxu0 0.0
    %502 = vmatpush1.msra.mxu0 0.0
    %503 = vmatprep.subr.mxu0 0.0
    %504 = vmatpush1.msra.mxu0 0.0
    %505 = vmatprep.subr.mxu0 0.0
    %506 = vmatpush1.msra.mxu0 0.0
    %507 = vmatprep.subr.mxu0 0.0
    %508 = vmatpush1.msra.mxu0 0.0
    %509 = vmatprep.subr.mxu0 0.0
    %510 = vmatpush1.msra.mxu0 0.0
    %511 = vmatprep.mubr.f32.mxu0 0.0
    %512 = vmatmul.mubr.f32.gmra.mrb[0].mxu0 %v445
    %v513 = vpop.f32.mrb[0].mxu0
    %v514 = vadd.f32 0.0, %v513
    %v515 = vpop.f32.mrb[0].mxu0
    %516 = vdwg.mxu0
    %517 = vrot.lane.b32.xlu0 %v177, 112
    %v518 = vpop.permute.xlu0 %517
    %519 = vrot.lane.b32.xlu0 %v177, 80
    %v520 = vpop.permute.xlu0 %519
    %v521 = vsel %vm188, %v518, 0
    %v523 = vsel %vm188, %v520, 0
    %525 = vmatprep.subr.mxu0 0.0
    %526 = vmatpush1.xpose.msra.mxu0 %v523
    %527 = vmatprep.subr.mxu0 0.0
    %528 = vmatpush1.xpose.msra.mxu0 0.0
    %529 = vmatprep.subr.mxu0 0.0
    %530 = vmatpush1.xpose.msra.mxu0 0.0
    %531 = vmatprep.subr.mxu0 0.0
    %532 = vmatpush1.xpose.msra.mxu0 0.0
    %533 = vmatprep.subr.mxu0 0.0
    %534 = vmatpush1.xpose.msra.mxu0 0.0
    %535 = vmatprep.subr.mxu0 0.0
    %536 = vmatpush1.xpose.msra.mxu0 0.0
    %537 = vmatprep.subr.mxu0 0.0
    %538 = vmatpush1.xpose.msra.mxu0 0.0
    %539 = vmatprep.subr.mxu0 0.0
    %540 = vmatpush1.xpose.msra.mxu0 0.0
    %541 = vmatprep.subr.mxu0 0.0
    %542 = vmatpush1.xpose.msra.mxu0 0.0
    %543 = vmatprep.subr.mxu0 0.0
    %544 = vmatpush1.xpose.msra.mxu0 0.0
    %545 = vmatprep.subr.mxu0 0.0
    %546 = vmatpush1.xpose.msra.mxu0 0.0
    %547 = vmatprep.subr.mxu0 0.0
    %548 = vmatpush1.xpose.msra.mxu0 0.0
    %549 = vmatprep.subr.mxu0 0.0
    %550 = vmatpush1.xpose.msra.mxu0 0.0
    %551 = vmatprep.subr.mxu0 0.0
    %552 = vmatpush1.xpose.msra.mxu0 0.0
    %553 = vmatprep.subr.mxu0 0.0
    %554 = vmatpush1.xpose.msra.mxu0 0.0
    %555 = vmatprep.subr.mxu0 0.0
    %556 = vmatpush1.xpose.msra.mxu0 0.0
    %557 = vmatprep.subr.mxu0 0.0
    %558 = vmatpush1.xpose.msra.mxu0 0.0
    %559 = vmatprep.subr.mxu0 0.0
    %560 = vmatpush1.xpose.msra.mxu0 0.0
    %561 = vmatprep.subr.mxu0 0.0
    %562 = vmatpush1.xpose.msra.mxu0 0.0
    %563 = vmatprep.subr.mxu0 0.0
    %564 = vmatpush1.xpose.msra.mxu0 0.0
    %565 = vmatprep.subr.mxu0 0.0
    %566 = vmatpush1.xpose.msra.mxu0 0.0
    %567 = vmatprep.subr.mxu0 0.0
    %568 = vmatpush1.xpose.msra.mxu0 0.0
    %569 = vmatprep.subr.mxu0 0.0
    %570 = vmatpush1.xpose.msra.mxu0 0.0
    %571 = vmatprep.subr.mxu0 0.0
    %572 = vmatpush1.xpose.msra.mxu0 0.0
    %573 = vmatprep.subr.mxu0 0.0
    %574 = vmatpush1.xpose.msra.mxu0 0.0
    %575 = vmatprep.subr.mxu0 0.0
    %576 = vmatpush1.xpose.msra.mxu0 0.0
    %577 = vmatprep.subr.mxu0 0.0
    %578 = vmatpush1.xpose.msra.mxu0 0.0
    %579 = vmatprep.subr.mxu0 0.0
    %580 = vmatpush1.xpose.msra.mxu0 0.0
    %581 = vmatprep.subr.mxu0 0.0
    %582 = vmatpush1.xpose.msra.mxu0 0.0
    %583 = vmatprep.subr.mxu0 0.0
    %584 = vmatpush1.xpose.msra.mxu0 0.0
    %585 = vmatprep.subr.mxu0 0.0
    %586 = vmatpush1.xpose.msra.mxu0 0.0
    %587 = vmatprep.subr.mxu0 0.0
    %588 = vmatpush1.xpose.msra.mxu0 0.0
    %589 = vmatprep.mubr.f32.mxu0 0.0
    %590 = vmatmul.mubr.f32.gmra.mrb[0].mxu0 %v521
    %v591 = vpop.f32.mrb[0].mxu0
    %v592 = vadd.f32 0.0, %v591
    %v593 = vpop.f32.mrb[0].mxu0
    %594 = vdwg.mxu0
    %v595 = vmul.f32 %v592, 0.35355338
    %v596 = vsel %vm188, %v595, -inf
    %597 = vmax.xlane.f32.xlu0 %v596
    %v598 = vpop.xlane.xlu0 %597
    %v599 = vsub.f32 %v595, %v598
    %v600 = vmul.f32 %v599, 1.442695
    %v601 = vpow.pop %v600
    %v602 = vsel %vm188, %v601, 0.0
    %603 = vadd.xlane.f32.xlu0 %v602
    %v604 = vpop.xlane.xlu0 %603
    %v605 = vrcp.pop %v604
    %v606 = vmul.f32 %v601, %v605
    %607 = vrot.lane.b32.xlu0 %v177, 48
    %v608 = vpop.permute.xlu0 %607
    %v611 = vsel %vm188, %v606, 0
    %613 = vmatprep.subr.mxu0 0.0
    %614 = vmatpush1.msra.mxu0 %v608
    %615 = vmatprep.subr.mxu0 0.0
    %616 = vmatpush1.msra.mxu0 0.0
    %617 = vmatprep.subr.mxu0 0.0
    %618 = vmatpush1.msra.mxu0 0.0
    %619 = vmatprep.subr.mxu0 0.0
    %620 = vmatpush1.msra.mxu0 0.0
    %621 = vmatprep.subr.mxu0 0.0
    %622 = vmatpush1.msra.mxu0 0.0
    %623 = vmatprep.subr.mxu0 0.0
    %624 = vmatpush1.msra.mxu0 0.0
    %625 = vmatprep.subr.mxu0 0.0
    %626 = vmatpush1.msra.mxu0 0.0
    %627 = vmatprep.subr.mxu0 0.0
    %628 = vmatpush1.msra.mxu0 0.0
    %629 = vmatprep.subr.mxu0 0.0
    %630 = vmatpush1.msra.mxu0 0.0
    %631 = vmatprep.subr.mxu0 0.0
    %632 = vmatpush1.msra.mxu0 0.0
    %633 = vmatprep.subr.mxu0 0.0
    %634 = vmatpush1.msra.mxu0 0.0
    %635 = vmatprep.subr.mxu0 0.0
    %636 = vmatpush1.msra.mxu0 0.0
    %637 = vmatprep.subr.mxu0 0.0
    %638 = vmatpush1.msra.mxu0 0.0
    %639 = vmatprep.subr.mxu0 0.0
    %640 = vmatpush1.msra.mxu0 0.0
    %641 = vmatprep.subr.mxu0 0.0
    %642 = vmatpush1.msra.mxu0 0.0
    %643 = vmatprep.subr.mxu0 0.0
    %644 = vmatpush1.msra.mxu0 0.0
    %645 = vmatprep.subr.mxu0 0.0
    %646 = vmatpush1.msra.mxu0 0.0
    %647 = vmatprep.subr.mxu0 0.0
    %648 = vmatpush1.msra.mxu0 0.0
    %649 = vmatprep.subr.mxu0 0.0
    %650 = vmatpush1.msra.mxu0 0.0
    %651 = vmatprep.subr.mxu0 0.0
    %652 = vmatpush1.msra.mxu0 0.0
    %653 = vmatprep.subr.mxu0 0.0
    %654 = vmatpush1.msra.mxu0 0.0
    %655 = vmatprep.subr.mxu0 0.0
    %656 = vmatpush1.msra.mxu0 0.0
    %657 = vmatprep.subr.mxu0 0.0
    %658 = vmatpush1.msra.mxu0 0.0
    %659 = vmatprep.subr.mxu0 0.0
    %660 = vmatpush1.msra.mxu0 0.0
    %661 = vmatprep.subr.mxu0 0.0
    %662 = vmatpush1.msra.mxu0 0.0
    %663 = vmatprep.subr.mxu0 0.0
    %664 = vmatpush1.msra.mxu0 0.0
    %665 = vmatprep.subr.mxu0 0.0
    %666 = vmatpush1.msra.mxu0 0.0
    %667 = vmatprep.subr.mxu0 0.0
    %668 = vmatpush1.msra.mxu0 0.0
    %669 = vmatprep.subr.mxu0 0.0
    %670 = vmatpush1.msra.mxu0 0.0
    %671 = vmatprep.subr.mxu0 0.0
    %672 = vmatpush1.msra.mxu0 0.0
    %673 = vmatprep.subr.mxu0 0.0
    %674 = vmatpush1.msra.mxu0 0.0
    %675 = vmatprep.subr.mxu0 0.0
    %676 = vmatpush1.msra.mxu0 0.0
    %677 = vmatprep.mubr.f32.mxu0 0.0
    %678 = vmatmul.mubr.f32.gmra.mrb[0].mxu0 %v611
    %v679 = vpop.f32.mrb[0].mxu0
    %v680 = vadd.f32 0.0, %v679
    %v681 = vpop.f32.mrb[0].mxu0
    %682 = vdwg.mxu0
    %683 = vrot.lane.b32.xlu0 %v177, 104
    %v684 = vpop.permute.xlu0 %683
    %685 = vrot.lane.b32.xlu0 %v177, 72
    %v686 = vpop.permute.xlu0 %685
    %v687 = vsel %vm188, %v684, 0
    %v689 = vsel %vm188, %v686, 0
    %691 = vmatprep.subr.mxu0 0.0
    %692 = vmatpush1.xpose.msra.mxu0 %v689
    %693 = vmatprep.subr.mxu0 0.0
    %694 = vmatpush1.xpose.msra.mxu0 0.0
    %695 = vmatprep.subr.mxu0 0.0
    %696 = vmatpush1.xpose.msra.mxu0 0.0
    %697 = vmatprep.subr.mxu0 0.0
    %698 = vmatpush1.xpose.msra.mxu0 0.0
    %699 = vmatprep.subr.mxu0 0.0
    %700 = vmatpush1.xpose.msra.mxu0 0.0
    %701 = vmatprep.subr.mxu0 0.0
    %702 = vmatpush1.xpose.msra.mxu0 0.0
    %703 = vmatprep.subr.mxu0 0.0
    %704 = vmatpush1.xpose.msra.mxu0 0.0
    %705 = vmatprep.subr.mxu0 0.0
    %706 = vmatpush1.xpose.msra.mxu0 0.0
    %707 = vmatprep.subr.mxu0 0.0
    %708 = vmatpush1.xpose.msra.mxu0 0.0
    %709 = vmatprep.subr.mxu0 0.0
    %710 = vmatpush1.xpose.msra.mxu0 0.0
    %711 = vmatprep.subr.mxu0 0.0
    %712 = vmatpush1.xpose.msra.mxu0 0.0
    %713 = vmatprep.subr.mxu0 0.0
    %714 = vmatpush1.xpose.msra.mxu0 0.0
    %715 = vmatprep.subr.mxu0 0.0
    %716 = vmatpush1.xpose.msra.mxu0 0.0
    %717 = vmatprep.subr.mxu0 0.0
    %718 = vmatpush1.xpose.msra.mxu0 0.0
    %719 = vmatprep.subr.mxu0 0.0
    %720 = vmatpush1.xpose.msra.mxu0 0.0
    %721 = vmatprep.subr.mxu0 0.0
    %722 = vmatpush1.xpose.msra.mxu0 0.0
    %723 = vmatprep.subr.mxu0 0.0
    %724 = vmatpush1.xpose.msra.mxu0 0.0
    %725 = vmatprep.subr.mxu0 0.0
    %726 = vmatpush1.xpose.msra.mxu0 0.0
    %727 = vmatprep.subr.mxu0 0.0
    %728 = vmatpush1.xpose.msra.mxu0 0.0
    %729 = vmatprep.subr.mxu0 0.0
    %730 = vmatpush1.xpose.msra.mxu0 0.0
    %731 = vmatprep.subr.mxu0 0.0
    %732 = vmatpush1.xpose.msra.mxu0 0.0
    %733 = vmatprep.subr.mxu0 0.0
    %734 = vmatpush1.xpose.msra.mxu0 0.0
    %735 = vmatprep.subr.mxu0 0.0
    %736 = vmatpush1.xpose.msra.mxu0 0.0
    %737 = vmatprep.subr.mxu0 0.0
    %738 = vmatpush1.xpose.msra.mxu0 0.0
    %739 = vmatprep.subr.mxu0 0.0
    %740 = vmatpush1.xpose.msra.mxu0 0.0
    %741 = vmatprep.subr.mxu0 0.0
    %742 = vmatpush1.xpose.msra.mxu0 0.0
    %743 = vmatprep.subr.mxu0 0.0
    %744 = vmatpush1.xpose.msra.mxu0 0.0
    %745 = vmatprep.subr.mxu0 0.0
    %746 = vmatpush1.xpose.msra.mxu0 0.0
    %747 = vmatprep.subr.mxu0 0.0
    %748 = vmatpush1.xpose.msra.mxu0 0.0
    %749 = vmatprep.subr.mxu0 0.0
    %750 = vmatpush1.xpose.msra.mxu0 0.0
    %751 = vmatprep.subr.mxu0 0.0
    %752 = vmatpush1.xpose.msra.mxu0 0.0
    %753 = vmatprep.subr.mxu0 0.0
    %754 = vmatpush1.xpose.msra.mxu0 0.0
    %755 = vmatprep.mubr.f32.mxu0 0.0
    %756 = vmatmul.mubr.f32.gmra.mrb[0].mxu0 %v687
    %v757 = vpop.f32.mrb[0].mxu0
    %v758 = vadd.f32 0.0, %v757
    %v759 = vpop.f32.mrb[0].mxu0
    %760 = vdwg.mxu0
    %v761 = vmul.f32 %v758, 0.35355338
    %v762 = vsel %vm188, %v761, -inf
    %763 = vmax.xlane.f32.xlu0 %v762
    %v764 = vpop.xlane.xlu0 %763
    %v765 = vsub.f32 %v761, %v764
    %v766 = vmul.f32 %v765, 1.442695
    %v767 = vpow.pop %v766
    %v768 = vsel %vm188, %v767, 0.0
    %769 = vadd.xlane.f32.xlu0 %v768
    %v770 = vpop.xlane.xlu0 %769
    %v771 = vrcp.pop %v770
    %v772 = vmul.f32 %v767, %v771
    %773 = vrot.lane.b32.xlu0 %v177, 40
    %v774 = vpop.permute.xlu0 %773
    %v777 = vsel %vm188, %v772, 0
    %779 = vmatprep.subr.mxu0 0.0
    %780 = vmatpush1.msra.mxu0 %v774
    %781 = vmatprep.subr.mxu0 0.0
    %782 = vmatpush1.msra.mxu0 0.0
    %783 = vmatprep.subr.mxu0 0.0
    %784 = vmatpush1.msra.mxu0 0.0
    %785 = vmatprep.subr.mxu0 0.0
    %786 = vmatpush1.msra.mxu0 0.0
    %787 = vmatprep.subr.mxu0 0.0
    %788 = vmatpush1.msra.mxu0 0.0
    %789 = vmatprep.subr.mxu0 0.0
    %790 = vmatpush1.msra.mxu0 0.0
    %791 = vmatprep.subr.mxu0 0.0
    %792 = vmatpush1.msra.mxu0 0.0
    %793 = vmatprep.subr.mxu0 0.0
    %794 = vmatpush1.msra.mxu0 0.0
    %795 = vmatprep.subr.mxu0 0.0
    %796 = vmatpush1.msra.mxu0 0.0
    %797 = vmatprep.subr.mxu0 0.0
    %798 = vmatpush1.msra.mxu0 0.0
    %799 = vmatprep.subr.mxu0 0.0
    %800 = vmatpush1.msra.mxu0 0.0
    %801 = vmatprep.subr.mxu0 0.0
    %802 = vmatpush1.msra.mxu0 0.0
    %803 = vmatprep.subr.mxu0 0.0
    %804 = vmatpush1.msra.mxu0 0.0
    %805 = vmatprep.subr.mxu0 0.0
    %806 = vmatpush1.msra.mxu0 0.0
    %807 = vmatprep.subr.mxu0 0.0
    %808 = vmatpush1.msra.mxu0 0.0
    %809 = vmatprep.subr.mxu0 0.0
    %810 = vmatpush1.msra.mxu0 0.0
    %811 = vmatprep.subr.mxu0 0.0
    %812 = vmatpush1.msra.mxu0 0.0
    %813 = vmatprep.subr.mxu0 0.0
    %814 = vmatpush1.msra.mxu0 0.0
    %815 = vmatprep.subr.mxu0 0.0
    %816 = vmatpush1.msra.mxu0 0.0
    %817 = vmatprep.subr.mxu0 0.0
    %818 = vmatpush1.msra.mxu0 0.0
    %819 = vmatprep.subr.mxu0 0.0
    %820 = vmatpush1.msra.mxu0 0.0
    %821 = vmatprep.subr.mxu0 0.0
    %822 = vmatpush1.msra.mxu0 0.0
    %823 = vmatprep.subr.mxu0 0.0
    %824 = vmatpush1.msra.mxu0 0.0
    %825 = vmatprep.subr.mxu0 0.0
    %826 = vmatpush1.msra.mxu0 0.0
    %827 = vmatprep.subr.mxu0 0.0
    %828 = vmatpush1.msra.mxu0 0.0
    %829 = vmatprep.subr.mxu0 0.0
    %830 = vmatpush1.msra.mxu0 0.0
    %831 = vmatprep.subr.mxu0 0.0
    %832 = vmatpush1.msra.mxu0 0.0
    %833 = vmatprep.subr.mxu0 0.0
    %834 = vmatpush1.msra.mxu0 0.0
    %835 = vmatprep.subr.mxu0 0.0
    %836 = vmatpush1.msra.mxu0 0.0
    %837 = vmatprep.subr.mxu0 0.0
    %838 = vmatpush1.msra.mxu0 0.0
    %839 = vmatprep.subr.mxu0 0.0
    %840 = vmatpush1.msra.mxu0 0.0
    %841 = vmatprep.subr.mxu0 0.0
    %842 = vmatpush1.msra.mxu0 0.0
    %843 = vmatprep.mubr.f32.mxu0 0.0
    %844 = vmatmul.mubr.f32.gmra.mrb[0].mxu0 %v777
    %v845 = vpop.f32.mrb[0].mxu0
    %v846 = vadd.f32 0.0, %v845
    %v847 = vpop.f32.mrb[0].mxu0
    %848 = vdwg.mxu0
    %850 = vrot.lane.b32.xlu0 %v514, 8
    %v851 = vpop.permute.xlu0 %850
    %854 = vrot.lane.b32.xlu0 %v680, 16
    %v855 = vpop.permute.xlu0 %854
    %858 = vrot.lane.b32.xlu0 %v846, 24
    %v859 = vpop.permute.xlu0 %858
    %v861 = vsel %vm188, %v348, %v851
    %vm862 = vcmask 130048
    %v863 = vsel %vm862, %v861, %v855
    %vm864 = vcmask 195584
    %v865 = vsel %vm864, %v863, %v859
    %867 = vrot.lane.b32.xlu0 %v182, 96
    %v868 = vpop.permute.xlu0 %867
    %v869 = vsel %vm188, %v182, 0
    %v871 = vsel %vm188, %v868, 0
    %873 = vmatprep.subr.mxu0 0.0
    %874 = vmatpush1.xpose.msra.mxu0 %v871
    %875 = vmatprep.subr.mxu0 0.0
    %876 = vmatpush1.xpose.msra.mxu0 0.0
    %877 = vmatprep.subr.mxu0 0.0
    %878 = vmatpush1.xpose.msra.mxu0 0.0
    %879 = vmatprep.subr.mxu0 0.0
    %880 = vmatpush1.xpose.msra.mxu0 0.0
    %881 = vmatprep.subr.mxu0 0.0
    %882 = vmatpush1.xpose.msra.mxu0 0.0
    %883 = vmatprep.subr.mxu0 0.0
    %884 = vmatpush1.xpose.msra.mxu0 0.0
    %885 = vmatprep.subr.mxu0 0.0
    %886 = vmatpush1.xpose.msra.mxu0 0.0
    %887 = vmatprep.subr.mxu0 0.0
    %888 = vmatpush1.xpose.msra.mxu0 0.0
    %889 = vmatprep.subr.mxu0 0.0
    %890 = vmatpush1.xpose.msra.mxu0 0.0
    %891 = vmatprep.subr.mxu0 0.0
    %892 = vmatpush1.xpose.msra.mxu0 0.0
    %893 = vmatprep.subr.mxu0 0.0
    %894 = vmatpush1.xpose.msra.mxu0 0.0
    %895 = vmatprep.subr.mxu0 0.0
    %896 = vmatpush1.xpose.msra.mxu0 0.0
    %897 = vmatprep.subr.mxu0 0.0
    %898 = vmatpush1.xpose.msra.mxu0 0.0
    %899 = vmatprep.subr.mxu0 0.0
    %900 = vmatpush1.xpose.msra.mxu0 0.0
    %901 = vmatprep.subr.mxu0 0.0
    %902 = vmatpush1.xpose.msra.mxu0 0.0
    %903 = vmatprep.subr.mxu0 0.0
    %904 = vmatpush1.xpose.msra.mxu0 0.0
    %905 = vmatprep.subr.mxu0 0.0
    %906 = vmatpush1.xpose.msra.mxu0 0.0
    %907 = vmatprep.subr.mxu0 0.0
    %908 = vmatpush1.xpose.msra.mxu0 0.0
    %909 = vmatprep.subr.mxu0 0.0
    %910 = vmatpush1.xpose.msra.mxu0 0.0
    %911 = vmatprep.subr.mxu0 0.0
    %912 = vmatpush1.xpose.msra.mxu0 0.0
    %913 = vmatprep.subr.mxu0 0.0
    %914 = vmatpush1.xpose.msra.mxu0 0.0
    %915 = vmatprep.subr.mxu0 0.0
    %916 = vmatpush1.xpose.msra.mxu0 0.0
    %917 = vmatprep.subr.mxu0 0.0
    %918 = vmatpush1.xpose.msra.mxu0 0.0
    %919 = vmatprep.subr.mxu0 0.0
    %920 = vmatpush1.xpose.msra.mxu0 0.0
    %921 = vmatprep.subr.mxu0 0.0
    %922 = vmatpush1.xpose.msra.mxu0 0.0
    %923 = vmatprep.subr.mxu0 0.0
    %924 = vmatpush1.xpose.msra.mxu0 0.0
    %925 = vmatprep.subr.mxu0 0.0
    %926 = vmatpush1.xpose.msra.mxu0 0.0
    %927 = vmatprep.subr.mxu0 0.0
    %928 = vmatpush1.xpose.msra.mxu0 0.0
    %929 = vmatprep.subr.mxu0 0.0
    %930 = vmatpush1.xpose.msra.mxu0 0.0
    %931 = vmatprep.subr.mxu0 0.0
    %932 = vmatpush1.xpose.msra.mxu0 0.0
    %933 = vmatprep.subr.mxu0 0.0
    %934 = vmatpush1.xpose.msra.mxu0 0.0
    %935 = vmatprep.subr.mxu0 0.0
    %936 = vmatpush1.xpose.msra.mxu0 0.0
    %937 = vmatprep.mubr.f32.mxu0 0.0
    %938 = vmatmul.mubr.f32.gmra.mrb[0].mxu0 %v869
    %v939 = vpop.f32.mrb[0].mxu0
    %v940 = vadd.f32 0.0, %v939
    %v941 = vpop.f32.mrb[0].mxu0
    %942 = vdwg.mxu0
    %v943 = vmul.f32 %v940, 0.35355338
    %v944 = vsel %vm188, %v943, -inf
    %945 = vmax.xlane.f32.xlu0 %v944
    %v946 = vpop.xlane.xlu0 %945
    %v947 = vsub.f32 %v943, %v946
    %v948 = vmul.f32 %v947, 1.442695
    %v949 = vpow.pop %v948
    %v950 = vsel %vm188, %v949, 0.0
    %951 = vadd.xlane.f32.xlu0 %v950
    %v952 = vpop.xlane.xlu0 %951
    %v953 = vrcp.pop %v952
    %v954 = vmul.f32 %v949, %v953
    %955 = vrot.lane.b32.xlu0 %v182, 64
    %v956 = vpop.permute.xlu0 %955
    %v959 = vsel %vm188, %v954, 0
    %961 = vmatprep.subr.mxu0 0.0
    %962 = vmatpush1.msra.mxu0 %v956
    %963 = vmatprep.subr.mxu0 0.0
    %964 = vmatpush1.msra.mxu0 0.0
    %965 = vmatprep.subr.mxu0 0.0
    %966 = vmatpush1.msra.mxu0 0.0
    %967 = vmatprep.subr.mxu0 0.0
    %968 = vmatpush1.msra.mxu0 0.0
    %969 = vmatprep.subr.mxu0 0.0
    %970 = vmatpush1.msra.mxu0 0.0
    %971 = vmatprep.subr.mxu0 0.0
    %972 = vmatpush1.msra.mxu0 0.0
    %973 = vmatprep.subr.mxu0 0.0
    %974 = vmatpush1.msra.mxu0 0.0
    %975 = vmatprep.subr.mxu0 0.0
    %976 = vmatpush1.msra.mxu0 0.0
    %977 = vmatprep.subr.mxu0 0.0
    %978 = vmatpush1.msra.mxu0 0.0
    %979 = vmatprep.subr.mxu0 0.0
    %980 = vmatpush1.msra.mxu0 0.0
    %981 = vmatprep.subr.mxu0 0.0
    %982 = vmatpush1.msra.mxu0 0.0
    %983 = vmatprep.subr.mxu0 0.0
    %984 = vmatpush1.msra.mxu0 0.0
    %985 = vmatprep.subr.mxu0 0.0
    %986 = vmatpush1.msra.mxu0 0.0
    %987 = vmatprep.subr.mxu0 0.0
    %988 = vmatpush1.msra.mxu0 0.0
    %989 = vmatprep.subr.mxu0 0.0
    %990 = vmatpush1.msra.mxu0 0.0
    %991 = vmatprep.subr.mxu0 0.0
    %992 = vmatpush1.msra.mxu0 0.0
    %993 = vmatprep.subr.mxu0 0.0
    %994 = vmatpush1.msra.mxu0 0.0
    %995 = vmatprep.subr.mxu0 0.0
    %996 = vmatpush1.msra.mxu0 0.0
    %997 = vmatprep.subr.mxu0 0.0
    %998 = vmatpush1.msra.mxu0 0.0
    %999 = vmatprep.subr.mxu0 0.0
    %1000 = vmatpush1.msra.mxu0 0.0
    %1001 = vmatprep.subr.mxu0 0.0
    %1002 = vmatpush1.msra.mxu0 0.0
    %1003 = vmatprep.subr.mxu0 0.0
    %1004 = vmatpush1.msra.mxu0 0.0
    %1005 = vmatprep.subr.mxu0 0.0
    %1006 = vmatpush1.msra.mxu0 0.0
    %1007 = vmatprep.subr.mxu0 0.0
    %1008 = vmatpush1.msra.mxu0 0.0
    %1009 = vmatprep.subr.mxu0 0.0
    %1010 = vmatpush1.msra.mxu0 0.0
    %1011 = vmatprep.subr.mxu0 0.0
    %1012 = vmatpush1.msra.mxu0 0.0
    %1013 = vmatprep.subr.mxu0 0.0
    %1014 = vmatpush1.msra.mxu0 0.0
    %1015 = vmatprep.subr.mxu0 0.0
    %1016 = vmatpush1.msra.mxu0 0.0
    %1017 = vmatprep.subr.mxu0 0.0
    %1018 = vmatpush1.msra.mxu0 0.0
    %1019 = vmatprep.subr.mxu0 0.0
    %1020 = vmatpush1.msra.mxu0 0.0
    %1021 = vmatprep.subr.mxu0 0.0
    %1022 = vmatpush1.msra.mxu0 0.0
    %1023 = vmatprep.subr.mxu0 0.0
    %1024 = vmatpush1.msra.mxu0 0.0
    %1025 = vmatprep.mubr.f32.mxu0 0.0
    %1026 = vmatmul.mubr.f32.gmra.mrb[0].mxu0 %v959
    %v1027 = vpop.f32.mrb[0].mxu0
    %v1028 = vadd.f32 0.0, %v1027
    %v1029 = vpop.f32.mrb[0].mxu0
    %1030 = vdwg.mxu0
    %1031 = vrot.lane.b32.xlu0 %v182, 120
    %v1032 = vpop.permute.xlu0 %1031
    %1033 = vrot.lane.b32.xlu0 %v182, 88
    %v1034 = vpop.permute.xlu0 %1033
    %v1035 = vsel %vm188, %v1032, 0
    %v1037 = vsel %vm188, %v1034, 0
    %1039 = vmatprep.subr.mxu0 0.0
    %1040 = vmatpush1.xpose.msra.mxu0 %v1037
    %1041 = vmatprep.subr.mxu0 0.0
    %1042 = vmatpush1.xpose.msra.mxu0 0.0
    %1043 = vmatprep.subr.mxu0 0.0
    %1044 = vmatpush1.xpose.msra.mxu0 0.0
    %1045 = vmatprep.subr.mxu0 0.0
    %1046 = vmatpush1.xpose.msra.mxu0 0.0
    %1047 = vmatprep.subr.mxu0 0.0
    %1048 = vmatpush1.xpose.msra.mxu0 0.0
    %1049 = vmatprep.subr.mxu0 0.0
    %1050 = vmatpush1.xpose.msra.mxu0 0.0
    %1051 = vmatprep.subr.mxu0 0.0
    %1052 = vmatpush1.xpose.msra.mxu0 0.0
    %1053 = vmatprep.subr.mxu0 0.0
    %1054 = vmatpush1.xpose.msra.mxu0 0.0
    %1055 = vmatprep.subr.mxu0 0.0
    %1056 = vmatpush1.xpose.msra.mxu0 0.0
    %1057 = vmatprep.subr.mxu0 0.0
    %1058 = vmatpush1.xpose.msra.mxu0 0.0
    %1059 = vmatprep.subr.mxu0 0.0
    %1060 = vmatpush1.xpose.msra.mxu0 0.0
    %1061 = vmatprep.subr.mxu0 0.0
    %1062 = vmatpush1.xpose.msra.mxu0 0.0
    %1063 = vmatprep.subr.mxu0 0.0
    %1064 = vmatpush1.xpose.msra.mxu0 0.0
    %1065 = vmatprep.subr.mxu0 0.0
    %1066 = vmatpush1.xpose.msra.mxu0 0.0
    %1067 = vmatprep.subr.mxu0 0.0
    %1068 = vmatpush1.xpose.msra.mxu0 0.0
    %1069 = vmatprep.subr.mxu0 0.0
    %1070 = vmatpush1.xpose.msra.mxu0 0.0
    %1071 = vmatprep.subr.mxu0 0.0
    %1072 = vmatpush1.xpose.msra.mxu0 0.0
    %1073 = vmatprep.subr.mxu0 0.0
    %1074 = vmatpush1.xpose.msra.mxu0 0.0
    %1075 = vmatprep.subr.mxu0 0.0
    %1076 = vmatpush1.xpose.msra.mxu0 0.0
    %1077 = vmatprep.subr.mxu0 0.0
    %1078 = vmatpush1.xpose.msra.mxu0 0.0
    %1079 = vmatprep.subr.mxu0 0.0
    %1080 = vmatpush1.xpose.msra.mxu0 0.0
    %1081 = vmatprep.subr.mxu0 0.0
    %1082 = vmatpush1.xpose.msra.mxu0 0.0
    %1083 = vmatprep.subr.mxu0 0.0
    %1084 = vmatpush1.xpose.msra.mxu0 0.0
    %1085 = vmatprep.subr.mxu0 0.0
    %1086 = vmatpush1.xpose.msra.mxu0 0.0
    %1087 = vmatprep.subr.mxu0 0.0
    %1088 = vmatpush1.xpose.msra.mxu0 0.0
    %1089 = vmatprep.subr.mxu0 0.0
    %1090 = vmatpush1.xpose.msra.mxu0 0.0
    %1091 = vmatprep.subr.mxu0 0.0
    %1092 = vmatpush1.xpose.msra.mxu0 0.0
    %1093 = vmatprep.subr.mxu0 0.0
    %1094 = vmatpush1.xpose.msra.mxu0 0.0
    %1095 = vmatprep.subr.mxu0 0.0
    %1096 = vmatpush1.xpose.msra.mxu0 0.0
    %1097 = vmatprep.subr.mxu0 0.0
    %1098 = vmatpush1.xpose.msra.mxu0 0.0
    %1099 = vmatprep.subr.mxu0 0.0
    %1100 = vmatpush1.xpose.msra.mxu0 0.0
    %1101 = vmatprep.subr.mxu0 0.0
    %1102 = vmatpush1.xpose.msra.mxu0 0.0
    %1103 = vmatprep.mubr.f32.mxu0 0.0
    %1104 = vmatmul.mubr.f32.gmra.mrb[0].mxu0 %v1035
    %v1105 = vpop.f32.mrb[0].mxu0
    %v1106 = vadd.f32 0.0, %v1105
    %v1107 = vpop.f32.mrb[0].mxu0
    %1108 = vdwg.mxu0
    %v1109 = vmul.f32 %v1106, 0.35355338
    %v1110 = vsel %vm188, %v1109, -inf
    %1111 = vmax.xlane.f32.xlu0 %v1110
    %v1112 = vpop.xlane.xlu0 %1111
    %v1113 = vsub.f32 %v1109, %v1112
    %v1114 = vmul.f32 %v1113, 1.442695
    %v1115 = vpow.pop %v1114
    %v1116 = vsel %vm188, %v1115, 0.0
    %1117 = vadd.xlane.f32.xlu0 %v1116
    %v1118 = vpop.xlane.xlu0 %1117
    %v1119 = vrcp.pop %v1118
    %v1120 = vmul.f32 %v1115, %v1119
    %1121 = vrot.lane.b32.xlu0 %v182, 56
    %v1122 = vpop.permute.xlu0 %1121
    %v1125 = vsel %vm188, %v1120, 0
    %1127 = vmatprep.subr.mxu0 0.0
    %1128 = vmatpush1.msra.mxu0 %v1122
    %1129 = vmatprep.subr.mxu0 0.0
    %1130 = vmatpush1.msra.mxu0 0.0
    %1131 = vmatprep.subr.mxu0 0.0
    %1132 = vmatpush1.msra.mxu0 0.0
    %1133 = vmatprep.subr.mxu0 0.0
    %1134 = vmatpush1.msra.mxu0 0.0
    %1135 = vmatprep.subr.mxu0 0.0
    %1136 = vmatpush1.msra.mxu0 0.0
    %1137 = vmatprep.subr.mxu0 0.0
    %1138 = vmatpush1.msra.mxu0 0.0
    %1139 = vmatprep.subr.mxu0 0.0
    %1140 = vmatpush1.msra.mxu0 0.0
    %1141 = vmatprep.subr.mxu0 0.0
    %1142 = vmatpush1.msra.mxu0 0.0
    %1143 = vmatprep.subr.mxu0 0.0
    %1144 = vmatpush1.msra.mxu0 0.0
    %1145 = vmatprep.subr.mxu0 0.0
    %1146 = vmatpush1.msra.mxu0 0.0
    %1147 = vmatprep.subr.mxu0 0.0
    %1148 = vmatpush1.msra.mxu0 0.0
    %1149 = vmatprep.subr.mxu0 0.0
    %1150 = vmatpush1.msra.mxu0 0.0
    %1151 = vmatprep.subr.mxu0 0.0
    %1152 = vmatpush1.msra.mxu0 0.0
    %1153 = vmatprep.subr.mxu0 0.0
    %1154 = vmatpush1.msra.mxu0 0.0
    %1155 = vmatprep.subr.mxu0 0.0
    %1156 = vmatpush1.msra.mxu0 0.0
    %1157 = vmatprep.subr.mxu0 0.0
    %1158 = vmatpush1.msra.mxu0 0.0
    %1159 = vmatprep.subr.mxu0 0.0
    %1160 = vmatpush1.msra.mxu0 0.0
    %1161 = vmatprep.subr.mxu0 0.0
    %1162 = vmatpush1.msra.mxu0 0.0
    %1163 = vmatprep.subr.mxu0 0.0
    %1164 = vmatpush1.msra.mxu0 0.0
    %1165 = vmatprep.subr.mxu0 0.0
    %1166 = vmatpush1.msra.mxu0 0.0
    %1167 = vmatprep.subr.mxu0 0.0
    %1168 = vmatpush1.msra.mxu0 0.0
    %1169 = vmatprep.subr.mxu0 0.0
    %1170 = vmatpush1.msra.mxu0 0.0
    %1171 = vmatprep.subr.mxu0 0.0
    %1172 = vmatpush1.msra.mxu0 0.0
    %1173 = vmatprep.subr.mxu0 0.0
    %1174 = vmatpush1.msra.mxu0 0.0
    %1175 = vmatprep.subr.mxu0 0.0
    %1176 = vmatpush1.msra.mxu0 0.0
    %1177 = vmatprep.subr.mxu0 0.0
    %1178 = vmatpush1.msra.mxu0 0.0
    %1179 = vmatprep.subr.mxu0 0.0
    %1180 = vmatpush1.msra.mxu0 0.0
    %1181 = vmatprep.subr.mxu0 0.0
    %1182 = vmatpush1.msra.mxu0 0.0
    %1183 = vmatprep.subr.mxu0 0.0
    %1184 = vmatpush1.msra.mxu0 0.0
    %1185 = vmatprep.subr.mxu0 0.0
    %1186 = vmatpush1.msra.mxu0 0.0
    %1187 = vmatprep.subr.mxu0 0.0
    %1188 = vmatpush1.msra.mxu0 0.0
    %1189 = vmatprep.subr.mxu0 0.0
    %1190 = vmatpush1.msra.mxu0 0.0
    %1191 = vmatprep.mubr.f32.mxu0 0.0
    %1192 = vmatmul.mubr.f32.gmra.mrb[0].mxu0 %v1125
    %v1193 = vpop.f32.mrb[0].mxu0
    %v1194 = vadd.f32 0.0, %v1193
    %v1195 = vpop.f32.mrb[0].mxu0
    %1196 = vdwg.mxu0
    %1197 = vrot.lane.b32.xlu0 %v182, 112
    %v1198 = vpop.permute.xlu0 %1197
    %1199 = vrot.lane.b32.xlu0 %v182, 80
    %v1200 = vpop.permute.xlu0 %1199
    %v1201 = vsel %vm188, %v1198, 0
    %v1203 = vsel %vm188, %v1200, 0
    %1205 = vmatprep.subr.mxu0 0.0
    %1206 = vmatpush1.xpose.msra.mxu0 %v1203
    %1207 = vmatprep.subr.mxu0 0.0
    %1208 = vmatpush1.xpose.msra.mxu0 0.0
    %1209 = vmatprep.subr.mxu0 0.0
    %1210 = vmatpush1.xpose.msra.mxu0 0.0
    %1211 = vmatprep.subr.mxu0 0.0
    %1212 = vmatpush1.xpose.msra.mxu0 0.0
    %1213 = vmatprep.subr.mxu0 0.0
    %1214 = vmatpush1.xpose.msra.mxu0 0.0
    %1215 = vmatprep.subr.mxu0 0.0
    %1216 = vmatpush1.xpose.msra.mxu0 0.0
    %1217 = vmatprep.subr.mxu0 0.0
    %1218 = vmatpush1.xpose.msra.mxu0 0.0
    %1219 = vmatprep.subr.mxu0 0.0
    %1220 = vmatpush1.xpose.msra.mxu0 0.0
    %1221 = vmatprep.subr.mxu0 0.0
    %1222 = vmatpush1.xpose.msra.mxu0 0.0
    %1223 = vmatprep.subr.mxu0 0.0
    %1224 = vmatpush1.xpose.msra.mxu0 0.0
    %1225 = vmatprep.subr.mxu0 0.0
    %1226 = vmatpush1.xpose.msra.mxu0 0.0
    %1227 = vmatprep.subr.mxu0 0.0
    %1228 = vmatpush1.xpose.msra.mxu0 0.0
    %1229 = vmatprep.subr.mxu0 0.0
    %1230 = vmatpush1.xpose.msra.mxu0 0.0
    %1231 = vmatprep.subr.mxu0 0.0
    %1232 = vmatpush1.xpose.msra.mxu0 0.0
    %1233 = vmatprep.subr.mxu0 0.0
    %1234 = vmatpush1.xpose.msra.mxu0 0.0
    %1235 = vmatprep.subr.mxu0 0.0
    %1236 = vmatpush1.xpose.msra.mxu0 0.0
    %1237 = vmatprep.subr.mxu0 0.0
    %1238 = vmatpush1.xpose.msra.mxu0 0.0
    %1239 = vmatprep.subr.mxu0 0.0
    %1240 = vmatpush1.xpose.msra.mxu0 0.0
    %1241 = vmatprep.subr.mxu0 0.0
    %1242 = vmatpush1.xpose.msra.mxu0 0.0
    %1243 = vmatprep.subr.mxu0 0.0
    %1244 = vmatpush1.xpose.msra.mxu0 0.0
    %1245 = vmatprep.subr.mxu0 0.0
    %1246 = vmatpush1.xpose.msra.mxu0 0.0
    %1247 = vmatprep.subr.mxu0 0.0
    %1248 = vmatpush1.xpose.msra.mxu0 0.0
    %1249 = vmatprep.subr.mxu0 0.0
    %1250 = vmatpush1.xpose.msra.mxu0 0.0
    %1251 = vmatprep.subr.mxu0 0.0
    %1252 = vmatpush1.xpose.msra.mxu0 0.0
    %1253 = vmatprep.subr.mxu0 0.0
    %1254 = vmatpush1.xpose.msra.mxu0 0.0
    %1255 = vmatprep.subr.mxu0 0.0
    %1256 = vmatpush1.xpose.msra.mxu0 0.0
    %1257 = vmatprep.subr.mxu0 0.0
    %1258 = vmatpush1.xpose.msra.mxu0 0.0
    %1259 = vmatprep.subr.mxu0 0.0
    %1260 = vmatpush1.xpose.msra.mxu0 0.0
    %1261 = vmatprep.subr.mxu0 0.0
    %1262 = vmatpush1.xpose.msra.mxu0 0.0
    %1263 = vmatprep.subr.mxu0 0.0
    %1264 = vmatpush1.xpose.msra.mxu0 0.0
    %1265 = vmatprep.subr.mxu0 0.0
    %1266 = vmatpush1.xpose.msra.mxu0 0.0
    %1267 = vmatprep.subr.mxu0 0.0
    %1268 = vmatpush1.xpose.msra.mxu0 0.0
    %1269 = vmatprep.mubr.f32.mxu0 0.0
    %1270 = vmatmul.mubr.f32.gmra.mrb[0].mxu0 %v1201
    %v1271 = vpop.f32.mrb[0].mxu0
    %v1272 = vadd.f32 0.0, %v1271
    %v1273 = vpop.f32.mrb[0].mxu0
    %1274 = vdwg.mxu0
    %v1275 = vmul.f32 %v1272, 0.35355338
    %v1276 = vsel %vm188, %v1275, -inf
    %1277 = vmax.xlane.f32.xlu0 %v1276
    %v1278 = vpop.xlane.xlu0 %1277
    %v1279 = vsub.f32 %v1275, %v1278
    %v1280 = vmul.f32 %v1279, 1.442695
    %v1281 = vpow.pop %v1280
    %v1282 = vsel %vm188, %v1281, 0.0
    %1283 = vadd.xlane.f32.xlu0 %v1282
    %v1284 = vpop.xlane.xlu0 %1283
    %v1285 = vrcp.pop %v1284
    %v1286 = vmul.f32 %v1281, %v1285
    %1287 = vrot.lane.b32.xlu0 %v182, 48
    %v1288 = vpop.permute.xlu0 %1287
    %v1291 = vsel %vm188, %v1286, 0
    %1293 = vmatprep.subr.mxu0 0.0
    %1294 = vmatpush1.msra.mxu0 %v1288
    %1295 = vmatprep.subr.mxu0 0.0
    %1296 = vmatpush1.msra.mxu0 0.0
    %1297 = vmatprep.subr.mxu0 0.0
    %1298 = vmatpush1.msra.mxu0 0.0
    %1299 = vmatprep.subr.mxu0 0.0
    %1300 = vmatpush1.msra.mxu0 0.0
    %1301 = vmatprep.subr.mxu0 0.0
    %1302 = vmatpush1.msra.mxu0 0.0
    %1303 = vmatprep.subr.mxu0 0.0
    %1304 = vmatpush1.msra.mxu0 0.0
    %1305 = vmatprep.subr.mxu0 0.0
    %1306 = vmatpush1.msra.mxu0 0.0
    %1307 = vmatprep.subr.mxu0 0.0
    %1308 = vmatpush1.msra.mxu0 0.0
    %1309 = vmatprep.subr.mxu0 0.0
    %1310 = vmatpush1.msra.mxu0 0.0
    %1311 = vmatprep.subr.mxu0 0.0
    %1312 = vmatpush1.msra.mxu0 0.0
    %1313 = vmatprep.subr.mxu0 0.0
    %1314 = vmatpush1.msra.mxu0 0.0
    %1315 = vmatprep.subr.mxu0 0.0
    %1316 = vmatpush1.msra.mxu0 0.0
    %1317 = vmatprep.subr.mxu0 0.0
    %1318 = vmatpush1.msra.mxu0 0.0
    %1319 = vmatprep.subr.mxu0 0.0
    %1320 = vmatpush1.msra.mxu0 0.0
    %1321 = vmatprep.subr.mxu0 0.0
    %1322 = vmatpush1.msra.mxu0 0.0
    %1323 = vmatprep.subr.mxu0 0.0
    %1324 = vmatpush1.msra.mxu0 0.0
    %1325 = vmatprep.subr.mxu0 0.0
    %1326 = vmatpush1.msra.mxu0 0.0
    %1327 = vmatprep.subr.mxu0 0.0
    %1328 = vmatpush1.msra.mxu0 0.0
    %1329 = vmatprep.subr.mxu0 0.0
    %1330 = vmatpush1.msra.mxu0 0.0
    %1331 = vmatprep.subr.mxu0 0.0
    %1332 = vmatpush1.msra.mxu0 0.0
    %1333 = vmatprep.subr.mxu0 0.0
    %1334 = vmatpush1.msra.mxu0 0.0
    %1335 = vmatprep.subr.mxu0 0.0
    %1336 = vmatpush1.msra.mxu0 0.0
    %1337 = vmatprep.subr.mxu0 0.0
    %1338 = vmatpush1.msra.mxu0 0.0
    %1339 = vmatprep.subr.mxu0 0.0
    %1340 = vmatpush1.msra.mxu0 0.0
    %1341 = vmatprep.subr.mxu0 0.0
    %1342 = vmatpush1.msra.mxu0 0.0
    %1343 = vmatprep.subr.mxu0 0.0
    %1344 = vmatpush1.msra.mxu0 0.0
    %1345 = vmatprep.subr.mxu0 0.0
    %1346 = vmatpush1.msra.mxu0 0.0
    %1347 = vmatprep.subr.mxu0 0.0
    %1348 = vmatpush1.msra.mxu0 0.0
    %1349 = vmatprep.subr.mxu0 0.0
    %1350 = vmatpush1.msra.mxu0 0.0
    %1351 = vmatprep.subr.mxu0 0.0
    %1352 = vmatpush1.msra.mxu0 0.0
    %1353 = vmatprep.subr.mxu0 0.0
    %1354 = vmatpush1.msra.mxu0 0.0
    %1355 = vmatprep.subr.mxu0 0.0
    %1356 = vmatpush1.msra.mxu0 0.0
    %1357 = vmatprep.mubr.f32.mxu0 0.0
    %1358 = vmatmul.mubr.f32.gmra.mrb[0].mxu0 %v1291
    %v1359 = vpop.f32.mrb[0].mxu0
    %v1360 = vadd.f32 0.0, %v1359
    %v1361 = vpop.f32.mrb[0].mxu0
    %1362 = vdwg.mxu0
    %1363 = vrot.lane.b32.xlu0 %v182, 104
    %v1364 = vpop.permute.xlu0 %1363
    %1365 = vrot.lane.b32.xlu0 %v182, 72
    %v1366 = vpop.permute.xlu0 %1365
    %v1367 = vsel %vm188, %v1364, 0
    %v1369 = vsel %vm188, %v1366, 0
    %1371 = vmatprep.subr.mxu0 0.0
    %1372 = vmatpush1.xpose.msra.mxu0 %v1369
    %1373 = vmatprep.subr.mxu0 0.0
    %1374 = vmatpush1.xpose.msra.mxu0 0.0
    %1375 = vmatprep.subr.mxu0 0.0
    %1376 = vmatpush1.xpose.msra.mxu0 0.0
    %1377 = vmatprep.subr.mxu0 0.0
    %1378 = vmatpush1.xpose.msra.mxu0 0.0
    %1379 = vmatprep.subr.mxu0 0.0
    %1380 = vmatpush1.xpose.msra.mxu0 0.0
    %1381 = vmatprep.subr.mxu0 0.0
    %1382 = vmatpush1.xpose.msra.mxu0 0.0
    %1383 = vmatprep.subr.mxu0 0.0
    %1384 = vmatpush1.xpose.msra.mxu0 0.0
    %1385 = vmatprep.subr.mxu0 0.0
    %1386 = vmatpush1.xpose.msra.mxu0 0.0
    %1387 = vmatprep.subr.mxu0 0.0
    %1388 = vmatpush1.xpose.msra.mxu0 0.0
    %1389 = vmatprep.subr.mxu0 0.0
    %1390 = vmatpush1.xpose.msra.mxu0 0.0
    %1391 = vmatprep.subr.mxu0 0.0
    %1392 = vmatpush1.xpose.msra.mxu0 0.0
    %1393 = vmatprep.subr.mxu0 0.0
    %1394 = vmatpush1.xpose.msra.mxu0 0.0
    %1395 = vmatprep.subr.mxu0 0.0
    %1396 = vmatpush1.xpose.msra.mxu0 0.0
    %1397 = vmatprep.subr.mxu0 0.0
    %1398 = vmatpush1.xpose.msra.mxu0 0.0
    %1399 = vmatprep.subr.mxu0 0.0
    %1400 = vmatpush1.xpose.msra.mxu0 0.0
    %1401 = vmatprep.subr.mxu0 0.0
    %1402 = vmatpush1.xpose.msra.mxu0 0.0
    %1403 = vmatprep.subr.mxu0 0.0
    %1404 = vmatpush1.xpose.msra.mxu0 0.0
    %1405 = vmatprep.subr.mxu0 0.0
    %1406 = vmatpush1.xpose.msra.mxu0 0.0
    %1407 = vmatprep.subr.mxu0 0.0
    %1408 = vmatpush1.xpose.msra.mxu0 0.0
    %1409 = vmatprep.subr.mxu0 0.0
    %1410 = vmatpush1.xpose.msra.mxu0 0.0
    %1411 = vmatprep.subr.mxu0 0.0
    %1412 = vmatpush1.xpose.msra.mxu0 0.0
    %1413 = vmatprep.subr.mxu0 0.0
    %1414 = vmatpush1.xpose.msra.mxu0 0.0
    %1415 = vmatprep.subr.mxu0 0.0
    %1416 = vmatpush1.xpose.msra.mxu0 0.0
    %1417 = vmatprep.subr.mxu0 0.0
    %1418 = vmatpush1.xpose.msra.mxu0 0.0
    %1419 = vmatprep.subr.mxu0 0.0
    %1420 = vmatpush1.xpose.msra.mxu0 0.0
    %1421 = vmatprep.subr.mxu0 0.0
    %1422 = vmatpush1.xpose.msra.mxu0 0.0
    %1423 = vmatprep.subr.mxu0 0.0
    %1424 = vmatpush1.xpose.msra.mxu0 0.0
    %1425 = vmatprep.subr.mxu0 0.0
    %1426 = vmatpush1.xpose.msra.mxu0 0.0
    %1427 = vmatprep.subr.mxu0 0.0
    %1428 = vmatpush1.xpose.msra.mxu0 0.0
    %1429 = vmatprep.subr.mxu0 0.0
    %1430 = vmatpush1.xpose.msra.mxu0 0.0
    %1431 = vmatprep.subr.mxu0 0.0
    %1432 = vmatpush1.xpose.msra.mxu0 0.0
    %1433 = vmatprep.subr.mxu0 0.0
    %1434 = vmatpush1.xpose.msra.mxu0 0.0
    %1435 = vmatprep.mubr.f32.mxu0 0.0
    %1436 = vmatmul.mubr.f32.gmra.mrb[0].mxu0 %v1367
    %v1437 = vpop.f32.mrb[0].mxu0
    %v1438 = vadd.f32 0.0, %v1437
    %v1439 = vpop.f32.mrb[0].mxu0
    %1440 = vdwg.mxu0
    %v1441 = vmul.f32 %v1438, 0.35355338
    %v1442 = vsel %vm188, %v1441, -inf
    %1443 = vmax.xlane.f32.xlu0 %v1442
    %v1444 = vpop.xlane.xlu0 %1443
    %v1445 = vsub.f32 %v1441, %v1444
    %v1446 = vmul.f32 %v1445, 1.442695
    %v1447 = vpow.pop %v1446
    %v1448 = vsel %vm188, %v1447, 0.0
    %1449 = vadd.xlane.f32.xlu0 %v1448
    %v1450 = vpop.xlane.xlu0 %1449
    %v1451 = vrcp.pop %v1450
    %v1452 = vmul.f32 %v1447, %v1451
    %1453 = vrot.lane.b32.xlu0 %v182, 40
    %v1454 = vpop.permute.xlu0 %1453
    %v1457 = vsel %vm188, %v1452, 0
    %1459 = vmatprep.subr.mxu0 0.0
    %1460 = vmatpush1.msra.mxu0 %v1454
    %1461 = vmatprep.subr.mxu0 0.0
    %1462 = vmatpush1.msra.mxu0 0.0
    %1463 = vmatprep.subr.mxu0 0.0
    %1464 = vmatpush1.msra.mxu0 0.0
    %1465 = vmatprep.subr.mxu0 0.0
    %1466 = vmatpush1.msra.mxu0 0.0
    %1467 = vmatprep.subr.mxu0 0.0
    %1468 = vmatpush1.msra.mxu0 0.0
    %1469 = vmatprep.subr.mxu0 0.0
    %1470 = vmatpush1.msra.mxu0 0.0
    %1471 = vmatprep.subr.mxu0 0.0
    %1472 = vmatpush1.msra.mxu0 0.0
    %1473 = vmatprep.subr.mxu0 0.0
    %1474 = vmatpush1.msra.mxu0 0.0
    %1475 = vmatprep.subr.mxu0 0.0
    %1476 = vmatpush1.msra.mxu0 0.0
    %1477 = vmatprep.subr.mxu0 0.0
    %1478 = vmatpush1.msra.mxu0 0.0
    %1479 = vmatprep.subr.mxu0 0.0
    %1480 = vmatpush1.msra.mxu0 0.0
    %1481 = vmatprep.subr.mxu0 0.0
    %1482 = vmatpush1.msra.mxu0 0.0
    %1483 = vmatprep.subr.mxu0 0.0
    %1484 = vmatpush1.msra.mxu0 0.0
    %1485 = vmatprep.subr.mxu0 0.0
    %1486 = vmatpush1.msra.mxu0 0.0
    %1487 = vmatprep.subr.mxu0 0.0
    %1488 = vmatpush1.msra.mxu0 0.0
    %1489 = vmatprep.subr.mxu0 0.0
    %1490 = vmatpush1.msra.mxu0 0.0
    %1491 = vmatprep.subr.mxu0 0.0
    %1492 = vmatpush1.msra.mxu0 0.0
    %1493 = vmatprep.subr.mxu0 0.0
    %1494 = vmatpush1.msra.mxu0 0.0
    %1495 = vmatprep.subr.mxu0 0.0
    %1496 = vmatpush1.msra.mxu0 0.0
    %1497 = vmatprep.subr.mxu0 0.0
    %1498 = vmatpush1.msra.mxu0 0.0
    %1499 = vmatprep.subr.mxu0 0.0
    %1500 = vmatpush1.msra.mxu0 0.0
    %1501 = vmatprep.subr.mxu0 0.0
    %1502 = vmatpush1.msra.mxu0 0.0
    %1503 = vmatprep.subr.mxu0 0.0
    %1504 = vmatpush1.msra.mxu0 0.0
    %1505 = vmatprep.subr.mxu0 0.0
    %1506 = vmatpush1.msra.mxu0 0.0
    %1507 = vmatprep.subr.mxu0 0.0
    %1508 = vmatpush1.msra.mxu0 0.0
    %1509 = vmatprep.subr.mxu0 0.0
    %1510 = vmatpush1.msra.mxu0 0.0
    %1511 = vmatprep.subr.mxu0 0.0
    %1512 = vmatpush1.msra.mxu0 0.0
    %1513 = vmatprep.subr.mxu0 0.0
    %1514 = vmatpush1.msra.mxu0 0.0
    %1515 = vmatprep.subr.mxu0 0.0
    %1516 = vmatpush1.msra.mxu0 0.0
    %1517 = vmatprep.subr.mxu0 0.0
    %1518 = vmatpush1.msra.mxu0 0.0
    %1519 = vmatprep.subr.mxu0 0.0
    %1520 = vmatpush1.msra.mxu0 0.0
    %1521 = vmatprep.subr.mxu0 0.0
    %1522 = vmatpush1.msra.mxu0 0.0
    %1523 = vmatprep.mubr.f32.mxu0 0.0
    %1524 = vmatmul.mubr.f32.gmra.mrb[0].mxu0 %v1457
    %v1525 = vpop.f32.mrb[0].mxu0
    %v1526 = vadd.f32 0.0, %v1525
    %v1527 = vpop.f32.mrb[0].mxu0
    %1528 = vdwg.mxu0
    %1530 = vrot.lane.b32.xlu0 %v1194, 8
    %v1531 = vpop.permute.xlu0 %1530
    %1534 = vrot.lane.b32.xlu0 %v1360, 16
    %v1535 = vpop.permute.xlu0 %1534
    %1538 = vrot.lane.b32.xlu0 %v1526, 24
    %v1539 = vpop.permute.xlu0 %1538
    %v1541 = vsel %vm188, %v1028, %v1531
    %v1542 = vsel %vm862, %v1541, %v1535
    %v1543 = vsel %vm864, %v1542, %v1539
    %v1544 = vld [vmem:[%s5] sm:$0xff]
    %v1545 = vld [vmem:[%s5 + $0x8] sm:$0xff]
    %v1546 = vld [vmem:[%s5 + $0x10] sm:$0xff]
    %v1547 = vld [vmem:[%s5 + $0x18] sm:$0xff]
    %v1548 = vld [vmem:[%s6] sm:$0x1]
    %v1550 = vlaneseq
    %v1551 = vshrl.u32 %v1550, 7
    %v1552 = vsub.s32 0, %v1551
    %v1553 = vrot.slane %v1548, %v1552
    %v1556 = vsel %vm49, %v865, 0
    %v1559 = vsel %vm49, %v1543, 0
    %1561 = vmatprep.subr.mxu0 0.0
    %1562 = vmatpush1.msra.mxu0 %v1544
    %1563 = vmatprep.subr.mxu0 0.0
    %1564 = vmatpush1.msra.mxu0 %v1545
    %1565 = vmatprep.subr.mxu0 0.0
    %1566 = vmatpush1.msra.mxu0 %v1546
    %1567 = vmatprep.subr.mxu0 0.0
    %1568 = vmatpush1.msra.mxu0 %v1547
    %1569 = vmatprep.subr.mxu0 0.0
    %1570 = vmatpush1.msra.mxu0 0.0
    %1571 = vmatprep.subr.mxu0 0.0
    %1572 = vmatpush1.msra.mxu0 0.0
    %1573 = vmatprep.subr.mxu0 0.0
    %1574 = vmatpush1.msra.mxu0 0.0
    %1575 = vmatprep.subr.mxu0 0.0
    %1576 = vmatpush1.msra.mxu0 0.0
    %1577 = vmatprep.subr.mxu0 0.0
    %1578 = vmatpush1.msra.mxu0 0.0
    %1579 = vmatprep.subr.mxu0 0.0
    %1580 = vmatpush1.msra.mxu0 0.0
    %1581 = vmatprep.subr.mxu0 0.0
    %1582 = vmatpush1.msra.mxu0 0.0
    %1583 = vmatprep.subr.mxu0 0.0
    %1584 = vmatpush1.msra.mxu0 0.0
    %1585 = vmatprep.subr.mxu0 0.0
    %1586 = vmatpush1.msra.mxu0 0.0
    %1587 = vmatprep.subr.mxu0 0.0
    %1588 = vmatpush1.msra.mxu0 0.0
    %1589 = vmatprep.subr.mxu0 0.0
    %1590 = vmatpush1.msra.mxu0 0.0
    %1591 = vmatprep.subr.mxu0 0.0
    %1592 = vmatpush1.msra.mxu0 0.0
    %1593 = vmatprep.subr.mxu0 0.0
    %1594 = vmatpush1.msra.mxu0 0.0
    %1595 = vmatprep.subr.mxu0 0.0
    %1596 = vmatpush1.msra.mxu0 0.0
    %1597 = vmatprep.subr.mxu0 0.0
    %1598 = vmatpush1.msra.mxu0 0.0
    %1599 = vmatprep.subr.mxu0 0.0
    %1600 = vmatpush1.msra.mxu0 0.0
    %1601 = vmatprep.subr.mxu0 0.0
    %1602 = vmatpush1.msra.mxu0 0.0
    %1603 = vmatprep.subr.mxu0 0.0
    %1604 = vmatpush1.msra.mxu0 0.0
    %1605 = vmatprep.subr.mxu0 0.0
    %1606 = vmatpush1.msra.mxu0 0.0
    %1607 = vmatprep.subr.mxu0 0.0
    %1608 = vmatpush1.msra.mxu0 0.0
    %1609 = vmatprep.subr.mxu0 0.0
    %1610 = vmatpush1.msra.mxu0 0.0
    %1611 = vmatprep.subr.mxu0 0.0
    %1612 = vmatpush1.msra.mxu0 0.0
    %1613 = vmatprep.subr.mxu0 0.0
    %1614 = vmatpush1.msra.mxu0 0.0
    %1615 = vmatprep.subr.mxu0 0.0
    %1616 = vmatpush1.msra.mxu0 0.0
    %1617 = vmatprep.subr.mxu0 0.0
    %1618 = vmatpush1.msra.mxu0 0.0
    %1619 = vmatprep.subr.mxu0 0.0
    %1620 = vmatpush1.msra.mxu0 0.0
    %1621 = vmatprep.subr.mxu0 0.0
    %1622 = vmatpush1.msra.mxu0 0.0
    %1623 = vmatprep.subr.mxu0 0.0
    %1624 = vmatpush1.msra.mxu0 0.0
    %1625 = vmatprep.mubr.f32.mxu0 0.0
    %1626 = vmatmul.mubr.f32.gmra.mrb[0].mxu0 %v1556
    %v1627 = vpop.f32.mrb[0].mxu0
    %v1628 = vadd.f32 %v1553, %v1627
    %v1629 = vpop.f32.mrb[0].mxu0
    %1630 = vmatprep.mubr.f32.mxu0 0.0
    %1631 = vmatmul.mubr.f32.gmra.mrb[0].mxu0 %v1559
    %v1632 = vpop.f32.mrb[0].mxu0
    %v1633 = vadd.f32 %v1553, %v1632
    %v1634 = vpop.f32.mrb[0].mxu0
    %1635 = vdwg.mxu0
    %v1636 = vadd.f32 %v45, %v1628
    %v1637 = vadd.f32 %v46, %v1633
    %v1638 = vld [vmem:[%s7] sm:$0x1]
    %v1639 = vld [vmem:[%s8] sm:$0x1]
    %v1640 = vsel %vm49, %v1636, 0.0
    %1641 = vadd.xlane.f32.xlu0 %v1640
    %v1642 = vpop.xlane.xlu0 %1641
    %v1643 = vsel %vm49, %v1637, 0.0
    %1644 = vadd.xlane.f32.xlu0 %v1643
    %v1645 = vpop.xlane.xlu0 %1644
    %v1646 = vmul.f32 %v1642, %v56
    %v1647 = vmul.f32 %v1645, %v56
    %v1648 = vsub.f32 %v1636, %v1646
    %v1649 = vsub.f32 %v1637, %v1647
    %v1650 = vmul.f32 %v1648, %v1648
    %v1651 = vmul.f32 %v1649, %v1649
    %v1652 = vsel %vm49, %v1650, 0.0
    %1653 = vadd.xlane.f32.xlu0 %v1652
    %v1654 = vpop.xlane.xlu0 %1653
    %v1655 = vsel %vm49, %v1651, 0.0
    %1656 = vadd.xlane.f32.xlu0 %v1655
    %v1657 = vpop.xlane.xlu0 %1656
    %v1658 = vmul.f32 %v1654, %v56
    %v1659 = vmul.f32 %v1657, %v56
    %v1660 = vadd.f32 %v1658, 1e-07
    %v1661 = vadd.f32 %v1659, 1e-07
    %v1662 = vrsqrt.pop %v1660
    %v1663 = vrsqrt.pop %v1661
    %v1664 = vmul.f32 %v1648, %v1662
    %v1665 = vmul.f32 %v1649, %v1663
    %v1667 = vlaneseq
    %v1668 = vshrl.u32 %v1667, 7
    %v1669 = vsub.s32 0, %v1668
    %v1670 = vrot.slane %v1638, %v1669
    %v1672 = vmul.f32 %v1664, %v1670
    %v1673 = vmul.f32 %v1665, %v1670
    %v1675 = vlaneseq
    %v1676 = vshrl.u32 %v1675, 7
    %v1677 = vsub.s32 0, %v1676
    %v1678 = vrot.slane %v1639, %v1677
    %v1680 = vadd.f32 %v1672, %v1678
    %v1681 = vadd.f32 %v1673, %v1678
    %v1682 = vld [vmem:[%s9] sm:$0xff]
    %v1683 = vld [vmem:[%s9 + $0x8] sm:$0xff]
    %v1684 = vld [vmem:[%s9 + $0x10] sm:$0xff]
    %v1685 = vld [vmem:[%s9 + $0x18] sm:$0xff]
    %v1686 = vld [vmem:[%s10] sm:$0x1]
    %v1688 = vlaneseq
    %v1689 = vshrl.u32 %v1688, 7
    %v1690 = vsub.s32 0, %v1689
    %v1691 = vrot.slane %v1686, %v1690
    %v1694 = vsel %vm49, %v1680, 0
    %v1697 = vsel %vm49, %v1681, 0
    %1699 = vmatprep.subr.mxu0 0.0
    %1700 = vmatpush1.msra.mxu0 %v1682
    %1701 = vmatprep.subr.mxu0 0.0
    %1702 = vmatpush1.msra.mxu0 %v1683
    %1703 = vmatprep.subr.mxu0 0.0
    %1704 = vmatpush1.msra.mxu0 %v1684
    %1705 = vmatprep.subr.mxu0 0.0
    %1706 = vmatpush1.msra.mxu0 %v1685
    %1707 = vmatprep.subr.mxu0 0.0
    %1708 = vmatpush1.msra.mxu0 0.0
    %1709 = vmatprep.subr.mxu0 0.0
    %1710 = vmatpush1.msra.mxu0 0.0
    %1711 = vmatprep.subr.mxu0 0.0
    %1712 = vmatpush1.msra.mxu0 0.0
    %1713 = vmatprep.subr.mxu0 0.0
    %1714 = vmatpush1.msra.mxu0 0.0
    %1715 = vmatprep.subr.mxu0 0.0
    %1716 = vmatpush1.msra.mxu0 0.0
    %1717 = vmatprep.subr.mxu0 0.0
    %1718 = vmatpush1.msra.mxu0 0.0
    %1719 = vmatprep.subr.mxu0 0.0
    %1720 = vmatpush1.msra.mxu0 0.0
    %1721 = vmatprep.subr.mxu0 0.0
    %1722 = vmatpush1.msra.mxu0 0.0
    %1723 = vmatprep.subr.mxu0 0.0
    %1724 = vmatpush1.msra.mxu0 0.0
    %1725 = vmatprep.subr.mxu0 0.0
    %1726 = vmatpush1.msra.mxu0 0.0
    %1727 = vmatprep.subr.mxu0 0.0
    %1728 = vmatpush1.msra.mxu0 0.0
    %1729 = vmatprep.subr.mxu0 0.0
    %1730 = vmatpush1.msra.mxu0 0.0
    %1731 = vmatprep.subr.mxu0 0.0
    %1732 = vmatpush1.msra.mxu0 0.0
    %1733 = vmatprep.subr.mxu0 0.0
    %1734 = vmatpush1.msra.mxu0 0.0
    %1735 = vmatprep.subr.mxu0 0.0
    %1736 = vmatpush1.msra.mxu0 0.0
    %1737 = vmatprep.subr.mxu0 0.0
    %1738 = vmatpush1.msra.mxu0 0.0
    %1739 = vmatprep.subr.mxu0 0.0
    %1740 = vmatpush1.msra.mxu0 0.0
    %1741 = vmatprep.subr.mxu0 0.0
    %1742 = vmatpush1.msra.mxu0 0.0
    %1743 = vmatprep.subr.mxu0 0.0
    %1744 = vmatpush1.msra.mxu0 0.0
    %1745 = vmatprep.subr.mxu0 0.0
    %1746 = vmatpush1.msra.mxu0 0.0
    %1747 = vmatprep.subr.mxu0 0.0
    %1748 = vmatpush1.msra.mxu0 0.0
    %1749 = vmatprep.subr.mxu0 0.0
    %1750 = vmatpush1.msra.mxu0 0.0
    %1751 = vmatprep.subr.mxu0 0.0
    %1752 = vmatpush1.msra.mxu0 0.0
    %1753 = vmatprep.subr.mxu0 0.0
    %1754 = vmatpush1.msra.mxu0 0.0
    %1755 = vmatprep.subr.mxu0 0.0
    %1756 = vmatpush1.msra.mxu0 0.0
    %1757 = vmatprep.subr.mxu0 0.0
    %1758 = vmatpush1.msra.mxu0 0.0
    %1759 = vmatprep.subr.mxu0 0.0
    %1760 = vmatpush1.msra.mxu0 0.0
    %1761 = vmatprep.subr.mxu0 0.0
    %1762 = vmatpush1.msra.mxu0 0.0
    %1763 = vmatprep.mubr.f32.mxu0 0.0
    %1764 = vmatmul.mubr.f32.gmra.mrb[0].mxu0 %v1694
    %v1765 = vpop.f32.mrb[0].mxu0
    %v1766 = vadd.f32 %v1691, %v1765
    %v1767 = vpop.f32.mrb[0].mxu0
    %1768 = vmatprep.mubr.f32.mxu0 0.0
    %1769 = vmatmul.mubr.f32.gmra.mrb[0].mxu0 %v1697
    %v1770 = vpop.f32.mrb[0].mxu0
    %v1771 = vadd.f32 %v1691, %v1770
    %v1772 = vpop.f32.mrb[0].mxu0
    %1773 = vdwg.mxu0
    %v1774 = vmul.f32 %v1766, 0.5
    %v1775 = vmul.f32 %v1771, 0.5
    %v1776 = vmul.f32 %v1766, 0.70710677
    %v1777 = vmul.f32 %v1771, 0.70710677
    %vm1778 = vcmp.lt.f32.partialorder %v1776, 0.0
    %vm1779 = vcmp.lt.f32.partialorder %v1777, 0.0
    %v1780 = vsel %vm1778, -1.0, 1.0
    %v1781 = vsel %vm1779, -1.0, 1.0
    %v1782 = vand.u32 2147483647, %v1776
    %v1783 = vand.u32 2147483647, %v1777
    %v1784 = vmul.f32 %v1782, 0.3275911
    %v1785 = vmul.f32 %v1783, 0.3275911
    %v1786 = vadd.f32 %v1784, 1.0
    %v1787 = vadd.f32 %v1785, 1.0
    %v1788 = vrcp.pop %v1786
    %v1789 = vmul.f32 1.0, %v1788
    %v1790 = vrcp.pop %v1787
    %v1791 = vmul.f32 1.0, %v1790
    %v1792 = vmul.f32 %v1789, 1.0614054
    %v1793 = vmul.f32 %v1791, 1.0614054
    %v1794 = vadd.f32 %v1792, -1.4531521
    %v1795 = vadd.f32 %v1793, -1.4531521
    %v1796 = vmul.f32 %v1794, %v1789
    %v1797 = vmul.f32 %v1795, %v1791
    %v1798 = vadd.f32 %v1796, 1.4214138
    %v1799 = vadd.f32 %v1797, 1.4214138
    %v1800 = vmul.f32 %v1798, %v1789
    %v1801 = vmul.f32 %v1799, %v1791
    %v1802 = vadd.f32 %v1800, -0.28449672
    %v1803 = vadd.f32 %v1801, -0.28449672
    %v1804 = vmul.f32 %v1802, %v1789
    %v1805 = vmul.f32 %v1803, %v1791
    %v1806 = vadd.f32 %v1804, 0.2548296
    %v1807 = vadd.f32 %v1805, 0.2548296
    %v1808 = vmul.f32 %v1806, %v1789
    %v1809 = vmul.f32 %v1807, %v1791
    %v1810 = vsub.f32 0.0, %v1782
    %v1811 = vsub.f32 0.0, %v1783
    %v1812 = vmul.f32 %v1810, %v1782
    %v1813 = vmul.f32 %v1811, %v1783
    %v1814 = vmul.f32 %v1812, 1.442695
    %v1815 = vpow.pop %v1814
    %v1816 = vmul.f32 %v1813, 1.442695
    %v1817 = vpow.pop %v1816
    %v1818 = vmul.f32 %v1808, %v1815
    %v1819 = vmul.f32 %v1809, %v1817
    %v1820 = vsub.f32 1.0, %v1818
    %v1821 = vsub.f32 1.0, %v1819
    %v1822 = vmul.f32 %v1780, %v1820
    %v1823 = vmul.f32 %v1781, %v1821
    %v1824 = vadd.f32 %v1822, 1.0
    %v1825 = vadd.f32 %v1823, 1.0
    %v1826 = vmul.f32 %v1774, %v1824
    %v1827 = vmul.f32 %v1775, %v1825
    %v1828 = vld [vmem:[%s11] sm:$0xff]
    %v1829 = vld [vmem:[%s11 + $0x8] sm:$0xff]
    %v1830 = vld [vmem:[%s11 + $0x10] sm:$0xff]
    %v1831 = vld [vmem:[%s11 + $0x18] sm:$0xff]
    %v1832 = vld [vmem:[%s11 + $0x20] sm:$0xff]
    %v1833 = vld [vmem:[%s11 + $0x28] sm:$0xff]
    %v1834 = vld [vmem:[%s11 + $0x30] sm:$0xff]
    %v1835 = vld [vmem:[%s11 + $0x38] sm:$0xff]
    %v1836 = vld [vmem:[%s11 + $0x40] sm:$0xff]
    %v1837 = vld [vmem:[%s11 + $0x48] sm:$0xff]
    %v1838 = vld [vmem:[%s11 + $0x50] sm:$0xff]
    %v1839 = vld [vmem:[%s11 + $0x58] sm:$0xff]
    %v1840 = vld [vmem:[%s11 + $0x60] sm:$0xff]
    %v1841 = vld [vmem:[%s11 + $0x68] sm:$0xff]
    %v1842 = vld [vmem:[%s11 + $0x70] sm:$0xff]
    %v1843 = vld [vmem:[%s11 + $0x78] sm:$0xff]
    %v1844 = vld [vmem:[%s12] sm:$0x1]
    %v1846 = vlaneseq
    %v1847 = vshrl.u32 %v1846, 7
    %v1848 = vsub.s32 0, %v1847
    %v1849 = vrot.slane %v1844, %v1848
    %1851 = vmatprep.subr.mxu0 0.0
    %1852 = vmatpush1.msra.mxu0 %v1828
    %1853 = vmatprep.subr.mxu0 0.0
    %1854 = vmatpush1.msra.mxu0 %v1829
    %1855 = vmatprep.subr.mxu0 0.0
    %1856 = vmatpush1.msra.mxu0 %v1830
    %1857 = vmatprep.subr.mxu0 0.0
    %1858 = vmatpush1.msra.mxu0 %v1831
    %1859 = vmatprep.subr.mxu0 0.0
    %1860 = vmatpush1.msra.mxu0 %v1832
    %1861 = vmatprep.subr.mxu0 0.0
    %1862 = vmatpush1.msra.mxu0 %v1833
    %1863 = vmatprep.subr.mxu0 0.0
    %1864 = vmatpush1.msra.mxu0 %v1834
    %1865 = vmatprep.subr.mxu0 0.0
    %1866 = vmatpush1.msra.mxu0 %v1835
    %1867 = vmatprep.subr.mxu0 0.0
    %1868 = vmatpush1.msra.mxu0 %v1836
    %1869 = vmatprep.subr.mxu0 0.0
    %1870 = vmatpush1.msra.mxu0 %v1837
    %1871 = vmatprep.subr.mxu0 0.0
    %1872 = vmatpush1.msra.mxu0 %v1838
    %1873 = vmatprep.subr.mxu0 0.0
    %1874 = vmatpush1.msra.mxu0 %v1839
    %1875 = vmatprep.subr.mxu0 0.0
    %1876 = vmatpush1.msra.mxu0 %v1840
    %1877 = vmatprep.subr.mxu0 0.0
    %1878 = vmatpush1.msra.mxu0 %v1841
    %1879 = vmatprep.subr.mxu0 0.0
    %1880 = vmatpush1.msra.mxu0 %v1842
    %1881 = vmatprep.subr.mxu0 0.0
    %1882 = vmatpush1.msra.mxu0 %v1843
    %1883 = vmatprep.subr.mxu0 0.0
    %1884 = vmatpush1.msra.mxu0 0.0
    %1885 = vmatprep.subr.mxu0 0.0
    %1886 = vmatpush1.msra.mxu0 0.0
    %1887 = vmatprep.subr.mxu0 0.0
    %1888 = vmatpush1.msra.mxu0 0.0
    %1889 = vmatprep.subr.mxu0 0.0
    %1890 = vmatpush1.msra.mxu0 0.0
    %1891 = vmatprep.subr.mxu0 0.0
    %1892 = vmatpush1.msra.mxu0 0.0
    %1893 = vmatprep.subr.mxu0 0.0
    %1894 = vmatpush1.msra.mxu0 0.0
    %1895 = vmatprep.subr.mxu0 0.0
    %1896 = vmatpush1.msra.mxu0 0.0
    %1897 = vmatprep.subr.mxu0 0.0
    %1898 = vmatpush1.msra.mxu0 0.0
    %1899 = vmatprep.subr.mxu0 0.0
    %1900 = vmatpush1.msra.mxu0 0.0
    %1901 = vmatprep.subr.mxu0 0.0
    %1902 = vmatpush1.msra.mxu0 0.0
    %1903 = vmatprep.subr.mxu0 0.0
    %1904 = vmatpush1.msra.mxu0 0.0
    %1905 = vmatprep.subr.mxu0 0.0
    %1906 = vmatpush1.msra.mxu0 0.0
    %1907 = vmatprep.subr.mxu0 0.0
    %1908 = vmatpush1.msra.mxu0 0.0
    %1909 = vmatprep.subr.mxu0 0.0
    %1910 = vmatpush1.msra.mxu0 0.0
    %1911 = vmatprep.subr.mxu0 0.0
    %1912 = vmatpush1.msra.mxu0 0.0
    %1913 = vmatprep.subr.mxu0 0.0
    %1914 = vmatpush1.msra.mxu0 0.0
    %1915 = vmatprep.mubr.f32.mxu0 0.0
    %1916 = vmatmul.mubr.f32.gmra.mrb[0].mxu0 %v1826
    %v1917 = vpop.f32.mrb[0].mxu0
    %v1918 = vadd.f32 %v1849, %v1917
    %v1919 = vpop.f32.mrb[0].mxu0
    %1920 = vmatprep.mubr.f32.mxu0 0.0
    %1921 = vmatmul.mubr.f32.gmra.mrb[0].mxu0 %v1827
    %v1922 = vpop.f32.mrb[0].mxu0
    %v1923 = vadd.f32 %v1849, %v1922
    %v1924 = vpop.f32.mrb[0].mxu0
    %1925 = vdwg.mxu0
    %v1926 = vadd.f32 %v1636, %v1918
    %v1927 = vadd.f32 %v1637, %v1923
    %1928 = vst.msk [vmem:[#allocation2] sm:$0xff] %vm49, %v1926
    %1929 = vst.msk [vmem:[#allocation2 + $0x8] sm:$0xff] %vm49, %v1927
    // Predicated region
    $region54: #{tpu_custom_call.1} parent=1 // pred_check
      _
    $region55: #{tpu_custom_call.1} parent=1 // pred_check_branch
      %1931 = sbr.rel (0) target = $region57
    $region56: #{tpu_custom_call.1} parent=1 // pred_region
      %s1933 = ssub.s32 256, 256
      %1934 = vsyncadd [#allocation3], %s1933
      %s1935 = sshll.u32 [#allocation2], 4
      %s1936 = int_to_ptr.vmem [resolvable:$true] %s1935
      %1941 = dma.vmem_to_hbm [thread:$0]  %s1936, 256, %s13, [#allocation3], 128, 128, 8
    $region57: #{tpu_custom_call.1} parent=1 // pred_fallthru
      _
    // Predicated region
    $region58: #{tpu_custom_call.1} parent=1 // pred_check
      _
    $region59: #{tpu_custom_call.1} parent=1 // pred_check_branch
      %1943 = sbr.rel (0) target = $region61
    $region60: #{tpu_custom_call.1} parent=1 // pred_region
      %1944 = dma.done [#allocation3], 256
    $region61: #{tpu_custom_call.1} parent=1 // pred_fallthru
      _
    %1945 = vsyncpa [#allocation3], 1

</llo_original>
